<compile_context>
chip_gen: v5e
topology: v5e:2x2
jax: 0.10.0
libtpu: 0.0.40
codegen_flags: <defaults>
</compile_context>

<pallas_src>
import functools

import jax
import jax.numpy as jnp
from jax.experimental import pallas as pl
from jax.experimental.pallas import tpu as pltpu


def _layernorm(x, gamma, beta, eps=1e-5):
    # PyTorch nn.LayerNorm: biased variance over last dim
    mean = jnp.mean(x, axis=-1, keepdims=True)
    var = jnp.mean((x - mean) ** 2, axis=-1, keepdims=True)
    return (x - mean) * jax.lax.rsqrt(var + eps) * gamma + beta


# ---------------------------------------------------------------------------
# Single fused kernel: MHA + residual + LayerNorm + FFN + residual + LayerNorm,
# one batch element per grid step.  The intermediate `x` never leaves the core.
# ---------------------------------------------------------------------------
def decoder_layer_kernel(tgt_ref, mem_ref,
                         wq_ref, bq_ref, wk_ref, bk_ref, wv_ref, bv_ref,
                         wo_ref, bo_ref, g1_ref, beta1_ref,
                         w1_ref, b1_ref, w2_ref, b2_ref, g2_ref, beta2_ref,
                         out_ref, *, num_heads):
    tgt = tgt_ref[0]                      # (T, D)
    mem = mem_ref[0]                      # (S, D)
    T, D = tgt.shape
    hdk = wq_ref.shape[1]
    hdv = wv_ref.shape[1]
    dk = hdk // num_heads
    dv = hdv // num_heads

    # --- fused Q/K/V projections: one wide matmul per input ---------------
    # (softmax 1/sqrt(dk) scale is already folded into wq/bq by the wrapper)
    q = jnp.dot(tgt, wq_ref[...], preferred_element_type=jnp.float32) + bq_ref[...]   # (T, H*dk)
    k = jnp.dot(mem, wk_ref[...], preferred_element_type=jnp.float32) + bk_ref[...]   # (S, H*dk)
    v = jnp.dot(mem, wv_ref[...], preferred_element_type=jnp.float32) + bv_ref[...]   # (S, H*dv)

    # --- per-head attention, accumulated straight through W_o -------------
    # No concatenate, no explicit transpose: dot_general contracts on dk.
    attn = jnp.zeros((T, D), jnp.float32)
    for h in range(num_heads):            # static unroll; H tiny
        qh = q[:, h * dk:(h + 1) * dk]    # (T, dk)   static lane slice
        kh = k[:, h * dk:(h + 1) * dk]    # (S, dk)
        vh = v[:, h * dv:(h + 1) * dv]    # (S, dv)
        s = jax.lax.dot_general(qh, kh, (((1,), (1,)), ((), ())),
                                preferred_element_type=jnp.float32)        # (T, S)
        s = s - jnp.max(s, axis=-1, keepdims=True)
        p = jnp.exp(s)
        # exact reciprocal kept to preserve the 1e-4 f32 parity check;
        # approx=True (EUP vrcp) is a valid micro-opt at production shapes.
        p = p * pl.reciprocal(jnp.sum(p, axis=-1, keepdims=True), approx=False)
        ctx = jnp.dot(p, vh, preferred_element_type=jnp.float32)           # (T, dv)
        attn = attn + jnp.dot(ctx, wo_ref[h * dv:(h + 1) * dv, :],
                              preferred_element_type=jnp.float32)          # (T, D)
    attn = attn + bo_ref[...]

    # --- Residual #1: LayerNorm(tgt + attention) ---------------------------
    x = _layernorm(tgt + attn, g1_ref[...], beta1_ref[...])                # (T, D)

    # --- Residual #2: LayerNorm(x + FFN(x)), fused (x stays on-core) -------
    hid = jnp.dot(x, w1_ref[...], preferred_element_type=jnp.float32) + b1_ref[...]
    hid = jnp.maximum(hid, 0.0)
    y = jnp.dot(hid, w2_ref[...], preferred_element_type=jnp.float32) + b2_ref[...]
    out_ref[0] = _layernorm(x + y, g2_ref[...], beta2_ref[...])


def _full_spec(shape):
    # whole-array block, same block for every grid step (fetched once)
    return pl.BlockSpec(shape, lambda b: (0,) * len(shape))


def transformer_decoder_layer(tgt, memory, attn_params, ffn_params):
    B, T, D = tgt.shape
    S = memory.shape[1]
    H, _, dk = attn_params["wq"].shape
    dv = attn_params["wv"].shape[2]
    F = ffn_params["w1"].shape[1]
    scale = 1.0 / (dk ** 0.5)

    # Pack per-head projection weights/biases into single wide operands and
    # fold the softmax scale into the Q projection (free at runtime).
    wq = (jnp.transpose(attn_params["wq"], (1, 0, 2)) * scale).reshape(D, H * dk)
    bq = (attn_params["bq"] * scale).reshape(1, H * dk)
    wk = jnp.transpose(attn_params["wk"], (1, 0, 2)).reshape(D, H * dk)
    bk = attn_params["bk"].reshape(1, H * dk)
    wv = jnp.transpose(attn_params["wv"], (1, 0, 2)).reshape(D, H * dv)
    bv = attn_params["bv"].reshape(1, H * dv)

    kernel = functools.partial(decoder_layer_kernel, num_heads=H)

    return pl.pallas_call(
        kernel,
        out_shape=jax.ShapeDtypeStruct((B, T, D), jnp.float32),
        grid=(B,),
        in_specs=[
            pl.BlockSpec((1, T, D), lambda b: (b, 0, 0)),    # tgt
            pl.BlockSpec((1, S, D), lambda b: (b, 0, 0)),    # memory
            _full_spec((D, H * dk)), _full_spec((1, H * dk)),   # wq, bq (pre-scaled)
            _full_spec((D, H * dk)), _full_spec((1, H * dk)),   # wk, bk
            _full_spec((D, H * dv)), _full_spec((1, H * dv)),   # wv, bv
            _full_spec((H * dv, D)), _full_spec((1, D)),        # wo, bo
            _full_spec((1, D)), _full_spec((1, D)),             # LN1 gamma, beta
            _full_spec((D, F)), _full_spec((1, F)),             # w1, b1
            _full_spec((F, D)), _full_spec((1, D)),             # w2, b2
            _full_spec((1, D)), _full_spec((1, D)),             # LN2 gamma, beta
        ],
        out_specs=pl.BlockSpec((1, T, D), lambda b: (b, 0, 0)),
        compiler_params=pltpu.CompilerParams(
            # batch axis is independent -> shards across the 2 TCs on v7x
            dimension_semantics=("parallel",)),
    )(tgt, memory, wq, bq, wk, bk, wv, bv,
      attn_params["wo"], attn_params["bo"],
      attn_params["gamma"], attn_params["beta"],
      ffn_params["w1"], ffn_params["b1"],
      ffn_params["w2"], ffn_params["b2"],
      ffn_params["gamma"], ffn_params["beta"])


# ----------------------------- pure-JAX reference ---------------------------
def reference(tgt, mem, ap, fp):
    H, _, dk = ap["wq"].shape
    heads = []
    for h in range(H):
        q = tgt @ ap["wq"][h] + ap["bq"][h]
        k = mem @ ap["wk"][h] + ap["bk"][h]
        v = mem @ ap["wv"][h] + ap["bv"][h]
        s = jnp.einsum("btk,bsk->bts", q, k) / (dk ** 0.5)
        a = jax.nn.softmax(s, axis=-1)
        heads.append(jnp.einsum("bts,bsv->btv", a, v))
    attn = jnp.concatenate(heads, axis=-1) @ ap["wo"] + ap["bo"]
    x = _layernorm(tgt + attn, ap["gamma"], ap["beta"])
    hid = jnp.maximum(x @ fp["w1"] + fp["b1"], 0.0)
    y = hid @ fp["w2"] + fp["b2"]
    return _layernorm(x + y, fp["gamma"], fp["beta"])


if __name__ == "__main__":
    # small, module-consistent shapes
    B, T, S = 2, 8, 8           # batch, target seq, memory seq
    D, H, FF = 32, 4, 64        # dim_model, num_heads, dim_feedforward
    dk = dv = D // H

    key = jax.random.PRNGKey(0)
    ks = jax.random.split(key, 12)

    def init(k, shape, scale=0.1):
        return (scale * jax.random.normal(k, shape)).astype(jnp.float32)

    attn_params = dict(
        wq=init(ks[0], (H, D, dk)), bq=init(ks[1], (H, 1, dk)),
        wk=init(ks[2], (H, D, dk)), bk=init(ks[3], (H, 1, dk)),
        wv=init(ks[4], (H, D, dv)), bv=init(ks[5], (H, 1, dv)),
        wo=init(ks[6], (H * dv, D)), bo=init(ks[7], (1, D)),
        gamma=jnp.ones((1, D), jnp.float32), beta=jnp.zeros((1, D), jnp.float32),
    )
    ffn_params = dict(
        w1=init(ks[8], (D, FF)), b1=init(ks[9], (1, FF)),
        w2=init(ks[10], (FF, D)), b2=init(ks[11], (1, D)),
        gamma=jnp.ones((1, D), jnp.float32), beta=jnp.zeros((1, D), jnp.float32),
    )

    kt, km = jax.random.split(jax.random.PRNGKey(1))
    tgt = jax.random.normal(kt, (B, T, D), jnp.float32)
    memory = jax.random.normal(km, (B, S, D), jnp.float32)

    out = transformer_decoder_layer(tgt, memory, attn_params, ffn_params)
    out = jax.block_until_ready(out)

    ref = reference(tgt, memory, attn_params, ffn_params)
    assert out.shape == (B, T, D)
    assert jnp.allclose(out, ref, atol=1e-4, rtol=1e-4), "mismatch vs reference"

    print("KERNEL_OK")
</pallas_src>

<mosaic_0001>
module attributes {stable_mosaic.version = 11 : i64} {
  func.func @decoder_layer_kernel(%arg0: i32, %arg1: memref<1x8x32xf32, #tpu.memory_space<vmem>>, %arg2: memref<1x8x32xf32, #tpu.memory_space<vmem>>, %arg3: memref<32x32xf32, #tpu.memory_space<vmem>>, %arg4: memref<1x32xf32, #tpu.memory_space<vmem>>, %arg5: memref<32x32xf32, #tpu.memory_space<vmem>>, %arg6: memref<1x32xf32, #tpu.memory_space<vmem>>, %arg7: memref<32x32xf32, #tpu.memory_space<vmem>>, %arg8: memref<1x32xf32, #tpu.memory_space<vmem>>, %arg9: memref<32x32xf32, #tpu.memory_space<vmem>>, %arg10: memref<1x32xf32, #tpu.memory_space<vmem>>, %arg11: memref<1x32xf32, #tpu.memory_space<vmem>>, %arg12: memref<1x32xf32, #tpu.memory_space<vmem>>, %arg13: memref<32x64xf32, #tpu.memory_space<vmem>>, %arg14: memref<1x64xf32, #tpu.memory_space<vmem>>, %arg15: memref<64x32xf32, #tpu.memory_space<vmem>>, %arg16: memref<1x32xf32, #tpu.memory_space<vmem>>, %arg17: memref<1x32xf32, #tpu.memory_space<vmem>>, %arg18: memref<1x32xf32, #tpu.memory_space<vmem>>, %arg19: memref<1x8x32xf32, #tpu.memory_space<vmem>>) attributes {dimension_semantics = [#tpu.dimension_semantics<parallel>], iteration_bounds = array<i64: 2>, scalar_prefetch = 0 : i64, scratch_operands = 0 : i64, tpu.core_type = #tpu.core_type<tc>, window_params = [{transform_indices = @transform_0, window_bounds = array<i64: 1, 8, 32>}, {transform_indices = @transform_1, window_bounds = array<i64: 1, 8, 32>}, {pipeline_mode = #tpu.pipeline_mode<synchronous>, transform_indices = @transform_2, window_bounds = array<i64: 32, 32>}, {pipeline_mode = #tpu.pipeline_mode<synchronous>, transform_indices = @transform_3, window_bounds = array<i64: 1, 32>}, {pipeline_mode = #tpu.pipeline_mode<synchronous>, transform_indices = @transform_4, window_bounds = array<i64: 32, 32>}, {pipeline_mode = #tpu.pipeline_mode<synchronous>, transform_indices = @transform_5, window_bounds = array<i64: 1, 32>}, {pipeline_mode = #tpu.pipeline_mode<synchronous>, transform_indices = @transform_6, window_bounds = array<i64: 32, 32>}, {pipeline_mode = #tpu.pipeline_mode<synchronous>, transform_indices = @transform_7, window_bounds = array<i64: 1, 32>}, {pipeline_mode = #tpu.pipeline_mode<synchronous>, transform_indices = @transform_8, window_bounds = array<i64: 32, 32>}, {pipeline_mode = #tpu.pipeline_mode<synchronous>, transform_indices = @transform_9, window_bounds = array<i64: 1, 32>}, {pipeline_mode = #tpu.pipeline_mode<synchronous>, transform_indices = @transform_10, window_bounds = array<i64: 1, 32>}, {pipeline_mode = #tpu.pipeline_mode<synchronous>, transform_indices = @transform_11, window_bounds = array<i64: 1, 32>}, {pipeline_mode = #tpu.pipeline_mode<synchronous>, transform_indices = @transform_12, window_bounds = array<i64: 32, 64>}, {pipeline_mode = #tpu.pipeline_mode<synchronous>, transform_indices = @transform_13, window_bounds = array<i64: 1, 64>}, {pipeline_mode = #tpu.pipeline_mode<synchronous>, transform_indices = @transform_14, window_bounds = array<i64: 64, 32>}, {pipeline_mode = #tpu.pipeline_mode<synchronous>, transform_indices = @transform_15, window_bounds = array<i64: 1, 32>}, {pipeline_mode = #tpu.pipeline_mode<synchronous>, transform_indices = @transform_16, window_bounds = array<i64: 1, 32>}, {pipeline_mode = #tpu.pipeline_mode<synchronous>, transform_indices = @transform_17, window_bounds = array<i64: 1, 32>}, {transform_indices = @transform_18, window_bounds = array<i64: 1, 8, 32>}]} {
    %c0 = arith.constant 0 : index
    %c0_0 = arith.constant 0 : index
    %c0_1 = arith.constant 0 : index
    %0 = vector.load %arg1[%c0, %c0_0, %c0_1] : memref<1x8x32xf32, #tpu.memory_space<vmem>>, vector<1x8x32xf32>
    %1 = vector.shape_cast %0 : vector<1x8x32xf32> to vector<8x32xf32>
    %c0_2 = arith.constant 0 : index
    %c0_3 = arith.constant 0 : index
    %c0_4 = arith.constant 0 : index
    %2 = vector.load %arg2[%c0_2, %c0_3, %c0_4] : memref<1x8x32xf32, #tpu.memory_space<vmem>>, vector<1x8x32xf32>
    %3 = vector.shape_cast %2 : vector<1x8x32xf32> to vector<8x32xf32>
    %c0_5 = arith.constant 0 : index
    %c0_6 = arith.constant 0 : index
    %4 = vector.load %arg3[%c0_5, %c0_6] : memref<32x32xf32, #tpu.memory_space<vmem>>, vector<32x32xf32>
    %cst = arith.constant dense<0.000000e+00> : vector<8x32xf32>
    %5 = tpu.matmul %1, %4, %cst {dimension_numbers = #tpu.dot_dimension_numbers<[1], [0], [0], [1], [0, 0, 1, 1], [], []>} : vector<8x32xf32>, vector<32x32xf32>, vector<8x32xf32> -> vector<8x32xf32>
    %c0_7 = arith.constant 0 : index
    %c0_8 = arith.constant 0 : index
    %6 = vector.load %arg4[%c0_7, %c0_8] : memref<1x32xf32, #tpu.memory_space<vmem>>, vector<1x32xf32>
    %7 = vector.broadcast %6 : vector<1x32xf32> to vector<8x32xf32>
    %8 = arith.addf %5, %7 : vector<8x32xf32>
    %c0_9 = arith.constant 0 : index
    %c0_10 = arith.constant 0 : index
    %9 = vector.load %arg5[%c0_9, %c0_10] : memref<32x32xf32, #tpu.memory_space<vmem>>, vector<32x32xf32>
    %cst_11 = arith.constant dense<0.000000e+00> : vector<8x32xf32>
    %10 = tpu.matmul %3, %9, %cst_11 {dimension_numbers = #tpu.dot_dimension_numbers<[1], [0], [0], [1], [0, 0, 1, 1], [], []>} : vector<8x32xf32>, vector<32x32xf32>, vector<8x32xf32> -> vector<8x32xf32>
    %c0_12 = arith.constant 0 : index
    %c0_13 = arith.constant 0 : index
    %11 = vector.load %arg6[%c0_12, %c0_13] : memref<1x32xf32, #tpu.memory_space<vmem>>, vector<1x32xf32>
    %12 = vector.broadcast %11 : vector<1x32xf32> to vector<8x32xf32>
    %13 = arith.addf %10, %12 : vector<8x32xf32>
    %c0_14 = arith.constant 0 : index
    %c0_15 = arith.constant 0 : index
    %14 = vector.load %arg7[%c0_14, %c0_15] : memref<32x32xf32, #tpu.memory_space<vmem>>, vector<32x32xf32>
    %cst_16 = arith.constant dense<0.000000e+00> : vector<8x32xf32>
    %15 = tpu.matmul %3, %14, %cst_16 {dimension_numbers = #tpu.dot_dimension_numbers<[1], [0], [0], [1], [0, 0, 1, 1], [], []>} : vector<8x32xf32>, vector<32x32xf32>, vector<8x32xf32> -> vector<8x32xf32>
    %c0_17 = arith.constant 0 : index
    %c0_18 = arith.constant 0 : index
    %16 = vector.load %arg8[%c0_17, %c0_18] : memref<1x32xf32, #tpu.memory_space<vmem>>, vector<1x32xf32>
    %17 = vector.broadcast %16 : vector<1x32xf32> to vector<8x32xf32>
    %18 = arith.addf %15, %17 : vector<8x32xf32>
    %cst_19 = arith.constant 0.000000e+00 : f32
    %19 = vector.broadcast %cst_19 : f32 to vector<8x32xf32>
    %20 = vector.extract_strided_slice %8 {offsets = [0, 0], sizes = [8, 8], strides = [1, 1]} : vector<8x32xf32> to vector<8x8xf32>
    %21 = vector.extract_strided_slice %13 {offsets = [0, 0], sizes = [8, 8], strides = [1, 1]} : vector<8x32xf32> to vector<8x8xf32>
    %22 = vector.extract_strided_slice %18 {offsets = [0, 0], sizes = [8, 8], strides = [1, 1]} : vector<8x32xf32> to vector<8x8xf32>
    %cst_20 = arith.constant dense<0.000000e+00> : vector<8x8xf32>
    %23 = tpu.matmul %20, %21, %cst_20 {dimension_numbers = #tpu.dot_dimension_numbers<[1], [1], [0], [0], [0, 0, 1, 0], [], []>} : vector<8x8xf32>, vector<8x8xf32>, vector<8x8xf32> -> vector<8x8xf32>
    %cst_21 = arith.constant dense<0xFF800000> : vector<8xf32>
    %24 = vector.multi_reduction <maximumf>, %23, %cst_21 [1] : vector<8x8xf32> to vector<8xf32>
    %25 = vector.shape_cast %24 : vector<8xf32> to vector<8x1xf32>
    %26 = vector.broadcast %25 : vector<8x1xf32> to vector<8x8xf32>
    %27 = arith.subf %23, %26 : vector<8x8xf32>
    %28 = math.exp %27 : vector<8x8xf32>
    %cst_22 = arith.constant dense<0.000000e+00> : vector<8xf32>
    %29 = vector.multi_reduction <add>, %28, %cst_22 [1] : vector<8x8xf32> to vector<8xf32>
    %30 = vector.shape_cast %29 : vector<8xf32> to vector<8x1xf32>
    %31 = tpu.reciprocal %30 : vector<8x1xf32> -> vector<8x1xf32>
    %32 = vector.broadcast %31 : vector<8x1xf32> to vector<8x8xf32>
    %33 = arith.mulf %28, %32 : vector<8x8xf32>
    %cst_23 = arith.constant dense<0.000000e+00> : vector<8x8xf32>
    %34 = tpu.matmul %33, %22, %cst_23 {dimension_numbers = #tpu.dot_dimension_numbers<[1], [0], [0], [1], [0, 0, 1, 1], [], []>} : vector<8x8xf32>, vector<8x8xf32>, vector<8x8xf32> -> vector<8x8xf32>
    %c0_24 = arith.constant 0 : index
    %c0_25 = arith.constant 0 : index
    %35 = vector.load %arg9[%c0_24, %c0_25] : memref<32x32xf32, #tpu.memory_space<vmem>>, vector<8x32xf32>
    %cst_26 = arith.constant dense<0.000000e+00> : vector<8x32xf32>
    %36 = tpu.matmul %34, %35, %cst_26 {dimension_numbers = #tpu.dot_dimension_numbers<[1], [0], [0], [1], [0, 0, 1, 1], [], []>} : vector<8x8xf32>, vector<8x32xf32>, vector<8x32xf32> -> vector<8x32xf32>
    %37 = arith.addf %19, %36 : vector<8x32xf32>
    %38 = vector.extract_strided_slice %8 {offsets = [0, 8], sizes = [8, 8], strides = [1, 1]} : vector<8x32xf32> to vector<8x8xf32>
    %39 = vector.extract_strided_slice %13 {offsets = [0, 8], sizes = [8, 8], strides = [1, 1]} : vector<8x32xf32> to vector<8x8xf32>
    %40 = vector.extract_strided_slice %18 {offsets = [0, 8], sizes = [8, 8], strides = [1, 1]} : vector<8x32xf32> to vector<8x8xf32>
    %cst_27 = arith.constant dense<0.000000e+00> : vector<8x8xf32>
    %41 = tpu.matmul %38, %39, %cst_27 {dimension_numbers = #tpu.dot_dimension_numbers<[1], [1], [0], [0], [0, 0, 1, 0], [], []>} : vector<8x8xf32>, vector<8x8xf32>, vector<8x8xf32> -> vector<8x8xf32>
    %cst_28 = arith.constant dense<0xFF800000> : vector<8xf32>
    %42 = vector.multi_reduction <maximumf>, %41, %cst_28 [1] : vector<8x8xf32> to vector<8xf32>
    %43 = vector.shape_cast %42 : vector<8xf32> to vector<8x1xf32>
    %44 = vector.broadcast %43 : vector<8x1xf32> to vector<8x8xf32>
    %45 = arith.subf %41, %44 : vector<8x8xf32>
    %46 = math.exp %45 : vector<8x8xf32>
    %cst_29 = arith.constant dense<0.000000e+00> : vector<8xf32>
    %47 = vector.multi_reduction <add>, %46, %cst_29 [1] : vector<8x8xf32> to vector<8xf32>
    %48 = vector.shape_cast %47 : vector<8xf32> to vector<8x1xf32>
    %49 = tpu.reciprocal %48 : vector<8x1xf32> -> vector<8x1xf32>
    %50 = vector.broadcast %49 : vector<8x1xf32> to vector<8x8xf32>
    %51 = arith.mulf %46, %50 : vector<8x8xf32>
    %cst_30 = arith.constant dense<0.000000e+00> : vector<8x8xf32>
    %52 = tpu.matmul %51, %40, %cst_30 {dimension_numbers = #tpu.dot_dimension_numbers<[1], [0], [0], [1], [0, 0, 1, 1], [], []>} : vector<8x8xf32>, vector<8x8xf32>, vector<8x8xf32> -> vector<8x8xf32>
    %c8 = arith.constant 8 : index
    %c0_31 = arith.constant 0 : index
    %53 = vector.load %arg9[%c8, %c0_31] : memref<32x32xf32, #tpu.memory_space<vmem>>, vector<8x32xf32>
    %cst_32 = arith.constant dense<0.000000e+00> : vector<8x32xf32>
    %54 = tpu.matmul %52, %53, %cst_32 {dimension_numbers = #tpu.dot_dimension_numbers<[1], [0], [0], [1], [0, 0, 1, 1], [], []>} : vector<8x8xf32>, vector<8x32xf32>, vector<8x32xf32> -> vector<8x32xf32>
    %55 = arith.addf %37, %54 : vector<8x32xf32>
    %56 = vector.extract_strided_slice %8 {offsets = [0, 16], sizes = [8, 8], strides = [1, 1]} : vector<8x32xf32> to vector<8x8xf32>
    %57 = vector.extract_strided_slice %13 {offsets = [0, 16], sizes = [8, 8], strides = [1, 1]} : vector<8x32xf32> to vector<8x8xf32>
    %58 = vector.extract_strided_slice %18 {offsets = [0, 16], sizes = [8, 8], strides = [1, 1]} : vector<8x32xf32> to vector<8x8xf32>
    %cst_33 = arith.constant dense<0.000000e+00> : vector<8x8xf32>
    %59 = tpu.matmul %56, %57, %cst_33 {dimension_numbers = #tpu.dot_dimension_numbers<[1], [1], [0], [0], [0, 0, 1, 0], [], []>} : vector<8x8xf32>, vector<8x8xf32>, vector<8x8xf32> -> vector<8x8xf32>
    %cst_34 = arith.constant dense<0xFF800000> : vector<8xf32>
    %60 = vector.multi_reduction <maximumf>, %59, %cst_34 [1] : vector<8x8xf32> to vector<8xf32>
    %61 = vector.shape_cast %60 : vector<8xf32> to vector<8x1xf32>
    %62 = vector.broadcast %61 : vector<8x1xf32> to vector<8x8xf32>
    %63 = arith.subf %59, %62 : vector<8x8xf32>
    %64 = math.exp %63 : vector<8x8xf32>
    %cst_35 = arith.constant dense<0.000000e+00> : vector<8xf32>
    %65 = vector.multi_reduction <add>, %64, %cst_35 [1] : vector<8x8xf32> to vector<8xf32>
    %66 = vector.shape_cast %65 : vector<8xf32> to vector<8x1xf32>
    %67 = tpu.reciprocal %66 : vector<8x1xf32> -> vector<8x1xf32>
    %68 = vector.broadcast %67 : vector<8x1xf32> to vector<8x8xf32>
    %69 = arith.mulf %64, %68 : vector<8x8xf32>
    %cst_36 = arith.constant dense<0.000000e+00> : vector<8x8xf32>
    %70 = tpu.matmul %69, %58, %cst_36 {dimension_numbers = #tpu.dot_dimension_numbers<[1], [0], [0], [1], [0, 0, 1, 1], [], []>} : vector<8x8xf32>, vector<8x8xf32>, vector<8x8xf32> -> vector<8x8xf32>
    %c16 = arith.constant 16 : index
    %c0_37 = arith.constant 0 : index
    %71 = vector.load %arg9[%c16, %c0_37] : memref<32x32xf32, #tpu.memory_space<vmem>>, vector<8x32xf32>
    %cst_38 = arith.constant dense<0.000000e+00> : vector<8x32xf32>
    %72 = tpu.matmul %70, %71, %cst_38 {dimension_numbers = #tpu.dot_dimension_numbers<[1], [0], [0], [1], [0, 0, 1, 1], [], []>} : vector<8x8xf32>, vector<8x32xf32>, vector<8x32xf32> -> vector<8x32xf32>
    %73 = arith.addf %55, %72 : vector<8x32xf32>
    %74 = vector.extract_strided_slice %8 {offsets = [0, 24], sizes = [8, 8], strides = [1, 1]} : vector<8x32xf32> to vector<8x8xf32>
    %75 = vector.extract_strided_slice %13 {offsets = [0, 24], sizes = [8, 8], strides = [1, 1]} : vector<8x32xf32> to vector<8x8xf32>
    %76 = vector.extract_strided_slice %18 {offsets = [0, 24], sizes = [8, 8], strides = [1, 1]} : vector<8x32xf32> to vector<8x8xf32>
    %cst_39 = arith.constant dense<0.000000e+00> : vector<8x8xf32>
    %77 = tpu.matmul %74, %75, %cst_39 {dimension_numbers = #tpu.dot_dimension_numbers<[1], [1], [0], [0], [0, 0, 1, 0], [], []>} : vector<8x8xf32>, vector<8x8xf32>, vector<8x8xf32> -> vector<8x8xf32>
    %cst_40 = arith.constant dense<0xFF800000> : vector<8xf32>
    %78 = vector.multi_reduction <maximumf>, %77, %cst_40 [1] : vector<8x8xf32> to vector<8xf32>
    %79 = vector.shape_cast %78 : vector<8xf32> to vector<8x1xf32>
    %80 = vector.broadcast %79 : vector<8x1xf32> to vector<8x8xf32>
    %81 = arith.subf %77, %80 : vector<8x8xf32>
    %82 = math.exp %81 : vector<8x8xf32>
    %cst_41 = arith.constant dense<0.000000e+00> : vector<8xf32>
    %83 = vector.multi_reduction <add>, %82, %cst_41 [1] : vector<8x8xf32> to vector<8xf32>
    %84 = vector.shape_cast %83 : vector<8xf32> to vector<8x1xf32>
    %85 = tpu.reciprocal %84 : vector<8x1xf32> -> vector<8x1xf32>
    %86 = vector.broadcast %85 : vector<8x1xf32> to vector<8x8xf32>
    %87 = arith.mulf %82, %86 : vector<8x8xf32>
    %cst_42 = arith.constant dense<0.000000e+00> : vector<8x8xf32>
    %88 = tpu.matmul %87, %76, %cst_42 {dimension_numbers = #tpu.dot_dimension_numbers<[1], [0], [0], [1], [0, 0, 1, 1], [], []>} : vector<8x8xf32>, vector<8x8xf32>, vector<8x8xf32> -> vector<8x8xf32>
    %c24 = arith.constant 24 : index
    %c0_43 = arith.constant 0 : index
    %89 = vector.load %arg9[%c24, %c0_43] : memref<32x32xf32, #tpu.memory_space<vmem>>, vector<8x32xf32>
    %cst_44 = arith.constant dense<0.000000e+00> : vector<8x32xf32>
    %90 = tpu.matmul %88, %89, %cst_44 {dimension_numbers = #tpu.dot_dimension_numbers<[1], [0], [0], [1], [0, 0, 1, 1], [], []>} : vector<8x8xf32>, vector<8x32xf32>, vector<8x32xf32> -> vector<8x32xf32>
    %91 = arith.addf %73, %90 : vector<8x32xf32>
    %c0_45 = arith.constant 0 : index
    %c0_46 = arith.constant 0 : index
    %92 = vector.load %arg10[%c0_45, %c0_46] : memref<1x32xf32, #tpu.memory_space<vmem>>, vector<1x32xf32>
    %93 = vector.broadcast %92 : vector<1x32xf32> to vector<8x32xf32>
    %94 = arith.addf %91, %93 : vector<8x32xf32>
    %95 = arith.addf %1, %94 : vector<8x32xf32>
    %c0_47 = arith.constant 0 : index
    %c0_48 = arith.constant 0 : index
    %96 = vector.load %arg11[%c0_47, %c0_48] : memref<1x32xf32, #tpu.memory_space<vmem>>, vector<1x32xf32>
    %c0_49 = arith.constant 0 : index
    %c0_50 = arith.constant 0 : index
    %97 = vector.load %arg12[%c0_49, %c0_50] : memref<1x32xf32, #tpu.memory_space<vmem>>, vector<1x32xf32>
    %cst_51 = arith.constant dense<0.000000e+00> : vector<8xf32>
    %98 = vector.multi_reduction <add>, %95, %cst_51 [1] : vector<8x32xf32> to vector<8xf32>
    %99 = vector.shape_cast %98 : vector<8xf32> to vector<8x1xf32>
    %cst_52 = arith.constant 3.200000e+01 : f32
    %100 = vector.broadcast %cst_52 : f32 to vector<8x1xf32>
    %101 = arith.divf %99, %100 : vector<8x1xf32>
    %102 = vector.broadcast %101 : vector<8x1xf32> to vector<8x32xf32>
    %103 = arith.subf %95, %102 : vector<8x32xf32>
    %104 = arith.mulf %103, %103 : vector<8x32xf32>
    %cst_53 = arith.constant dense<0.000000e+00> : vector<8xf32>
    %105 = vector.multi_reduction <add>, %104, %cst_53 [1] : vector<8x32xf32> to vector<8xf32>
    %106 = vector.shape_cast %105 : vector<8xf32> to vector<8x1xf32>
    %cst_54 = arith.constant 3.200000e+01 : f32
    %107 = vector.broadcast %cst_54 : f32 to vector<8x1xf32>
    %108 = arith.divf %106, %107 : vector<8x1xf32>
    %109 = vector.broadcast %101 : vector<8x1xf32> to vector<8x32xf32>
    %110 = arith.subf %95, %109 : vector<8x32xf32>
    %cst_55 = arith.constant 9.99999974E-6 : f32
    %111 = vector.broadcast %cst_55 : f32 to vector<8x1xf32>
    %112 = arith.addf %108, %111 : vector<8x1xf32>
    %113 = math.rsqrt %112 : vector<8x1xf32>
    %114 = vector.broadcast %113 : vector<8x1xf32> to vector<8x32xf32>
    %115 = arith.mulf %110, %114 : vector<8x32xf32>
    %116 = vector.broadcast %96 : vector<1x32xf32> to vector<8x32xf32>
    %117 = arith.mulf %115, %116 : vector<8x32xf32>
    %118 = vector.broadcast %97 : vector<1x32xf32> to vector<8x32xf32>
    %119 = arith.addf %117, %118 : vector<8x32xf32>
    %c0_56 = arith.constant 0 : index
    %c0_57 = arith.constant 0 : index
    %120 = vector.load %arg13[%c0_56, %c0_57] : memref<32x64xf32, #tpu.memory_space<vmem>>, vector<32x64xf32>
    %cst_58 = arith.constant dense<0.000000e+00> : vector<8x64xf32>
    %121 = tpu.matmul %119, %120, %cst_58 {dimension_numbers = #tpu.dot_dimension_numbers<[1], [0], [0], [1], [0, 0, 1, 1], [], []>} : vector<8x32xf32>, vector<32x64xf32>, vector<8x64xf32> -> vector<8x64xf32>
    %c0_59 = arith.constant 0 : index
    %c0_60 = arith.constant 0 : index
    %122 = vector.load %arg14[%c0_59, %c0_60] : memref<1x64xf32, #tpu.memory_space<vmem>>, vector<1x64xf32>
    %123 = vector.broadcast %122 : vector<1x64xf32> to vector<8x64xf32>
    %124 = arith.addf %121, %123 : vector<8x64xf32>
    %cst_61 = arith.constant 0.000000e+00 : f32
    %125 = vector.broadcast %cst_61 : f32 to vector<8x64xf32>
    %126 = arith.maximumf %124, %125 : vector<8x64xf32>
    %c0_62 = arith.constant 0 : index
    %c0_63 = arith.constant 0 : index
    %127 = vector.load %arg15[%c0_62, %c0_63] : memref<64x32xf32, #tpu.memory_space<vmem>>, vector<64x32xf32>
    %cst_64 = arith.constant dense<0.000000e+00> : vector<8x32xf32>
    %128 = tpu.matmul %126, %127, %cst_64 {dimension_numbers = #tpu.dot_dimension_numbers<[1], [0], [0], [1], [0, 0, 1, 1], [], []>} : vector<8x64xf32>, vector<64x32xf32>, vector<8x32xf32> -> vector<8x32xf32>
    %c0_65 = arith.constant 0 : index
    %c0_66 = arith.constant 0 : index
    %129 = vector.load %arg16[%c0_65, %c0_66] : memref<1x32xf32, #tpu.memory_space<vmem>>, vector<1x32xf32>
    %130 = vector.broadcast %129 : vector<1x32xf32> to vector<8x32xf32>
    %131 = arith.addf %128, %130 : vector<8x32xf32>
    %132 = arith.addf %119, %131 : vector<8x32xf32>
    %c0_67 = arith.constant 0 : index
    %c0_68 = arith.constant 0 : index
    %133 = vector.load %arg17[%c0_67, %c0_68] : memref<1x32xf32, #tpu.memory_space<vmem>>, vector<1x32xf32>
    %c0_69 = arith.constant 0 : index
    %c0_70 = arith.constant 0 : index
    %134 = vector.load %arg18[%c0_69, %c0_70] : memref<1x32xf32, #tpu.memory_space<vmem>>, vector<1x32xf32>
    %cst_71 = arith.constant dense<0.000000e+00> : vector<8xf32>
    %135 = vector.multi_reduction <add>, %132, %cst_71 [1] : vector<8x32xf32> to vector<8xf32>
    %136 = vector.shape_cast %135 : vector<8xf32> to vector<8x1xf32>
    %cst_72 = arith.constant 3.200000e+01 : f32
    %137 = vector.broadcast %cst_72 : f32 to vector<8x1xf32>
    %138 = arith.divf %136, %137 : vector<8x1xf32>
    %139 = vector.broadcast %138 : vector<8x1xf32> to vector<8x32xf32>
    %140 = arith.subf %132, %139 : vector<8x32xf32>
    %141 = arith.mulf %140, %140 : vector<8x32xf32>
    %cst_73 = arith.constant dense<0.000000e+00> : vector<8xf32>
    %142 = vector.multi_reduction <add>, %141, %cst_73 [1] : vector<8x32xf32> to vector<8xf32>
    %143 = vector.shape_cast %142 : vector<8xf32> to vector<8x1xf32>
    %cst_74 = arith.constant 3.200000e+01 : f32
    %144 = vector.broadcast %cst_74 : f32 to vector<8x1xf32>
    %145 = arith.divf %143, %144 : vector<8x1xf32>
    %146 = vector.broadcast %138 : vector<8x1xf32> to vector<8x32xf32>
    %147 = arith.subf %132, %146 : vector<8x32xf32>
    %cst_75 = arith.constant 9.99999974E-6 : f32
    %148 = vector.broadcast %cst_75 : f32 to vector<8x1xf32>
    %149 = arith.addf %145, %148 : vector<8x1xf32>
    %150 = math.rsqrt %149 : vector<8x1xf32>
    %151 = vector.broadcast %150 : vector<8x1xf32> to vector<8x32xf32>
    %152 = arith.mulf %147, %151 : vector<8x32xf32>
    %153 = vector.broadcast %133 : vector<1x32xf32> to vector<8x32xf32>
    %154 = arith.mulf %152, %153 : vector<8x32xf32>
    %155 = vector.broadcast %134 : vector<1x32xf32> to vector<8x32xf32>
    %156 = arith.addf %154, %155 : vector<8x32xf32>
    %c0_76 = arith.constant 0 : index
    %c0_77 = arith.constant 0 : index
    %c0_78 = arith.constant 0 : index
    %157 = vector.load %arg19[%c0_76, %c0_77, %c0_78] : memref<1x8x32xf32, #tpu.memory_space<vmem>>, vector<1x8x32xf32>
    %158 = vector.shape_cast %157 : vector<1x8x32xf32> to vector<8x32xf32>
    %159 = vector.shape_cast %156 : vector<8x32xf32> to vector<1x8x32xf32>
    tpu.vector_store %arg19[%c0_76, %c0_77, %c0_78], %159 {strides = array<i32>} : memref<1x8x32xf32, #tpu.memory_space<vmem>>, vector<1x8x32xf32>,
    return
  }
  func.func @transform_0(%arg0: i32) -> (i32, i32, i32) {
    %c0_i32 = arith.constant 0 : i32
    %c0_i32_0 = arith.constant 0 : i32
    %c0_i32_1 = arith.constant 0 : i32
    return %arg0, %c0_i32, %c0_i32_0 : i32, i32, i32
  }
  func.func @transform_1(%arg0: i32) -> (i32, i32, i32) {
    %c0_i32 = arith.constant 0 : i32
    %c0_i32_0 = arith.constant 0 : i32
    %c0_i32_1 = arith.constant 0 : i32
    return %arg0, %c0_i32, %c0_i32_0 : i32, i32, i32
  }
  func.func @transform_2(%arg0: i32) -> (i32, i32) {
    %c0_i32 = arith.constant 0 : i32
    %c0_i32_0 = arith.constant 0 : i32
    %c0_i32_1 = arith.constant 0 : i32
    return %c0_i32, %c0_i32_0 : i32, i32
  }
  func.func @transform_3(%arg0: i32) -> (i32, i32) {
    %c0_i32 = arith.constant 0 : i32
    %c0_i32_0 = arith.constant 0 : i32
    %c0_i32_1 = arith.constant 0 : i32
    return %c0_i32, %c0_i32_0 : i32, i32
  }
  func.func @transform_4(%arg0: i32) -> (i32, i32) {
    %c0_i32 = arith.constant 0 : i32
    %c0_i32_0 = arith.constant 0 : i32
    %c0_i32_1 = arith.constant 0 : i32
    return %c0_i32, %c0_i32_0 : i32, i32
  }
  func.func @transform_5(%arg0: i32) -> (i32, i32) {
    %c0_i32 = arith.constant 0 : i32
    %c0_i32_0 = arith.constant 0 : i32
    %c0_i32_1 = arith.constant 0 : i32
    return %c0_i32, %c0_i32_0 : i32, i32
  }
  func.func @transform_6(%arg0: i32) -> (i32, i32) {
    %c0_i32 = arith.constant 0 : i32
    %c0_i32_0 = arith.constant 0 : i32
    %c0_i32_1 = arith.constant 0 : i32
    return %c0_i32, %c0_i32_0 : i32, i32
  }
  func.func @transform_7(%arg0: i32) -> (i32, i32) {
    %c0_i32 = arith.constant 0 : i32
    %c0_i32_0 = arith.constant 0 : i32
    %c0_i32_1 = arith.constant 0 : i32
    return %c0_i32, %c0_i32_0 : i32, i32
  }
  func.func @transform_8(%arg0: i32) -> (i32, i32) {
    %c0_i32 = arith.constant 0 : i32
    %c0_i32_0 = arith.constant 0 : i32
    %c0_i32_1 = arith.constant 0 : i32
    return %c0_i32, %c0_i32_0 : i32, i32
  }
  func.func @transform_9(%arg0: i32) -> (i32, i32) {
    %c0_i32 = arith.constant 0 : i32
    %c0_i32_0 = arith.constant 0 : i32
    %c0_i32_1 = arith.constant 0 : i32
    return %c0_i32, %c0_i32_0 : i32, i32
  }
  func.func @transform_10(%arg0: i32) -> (i32, i32) {
    %c0_i32 = arith.constant 0 : i32
    %c0_i32_0 = arith.constant 0 : i32
    %c0_i32_1 = arith.constant 0 : i32
    return %c0_i32, %c0_i32_0 : i32, i32
  }
  func.func @transform_11(%arg0: i32) -> (i32, i32) {
    %c0_i32 = arith.constant 0 : i32
    %c0_i32_0 = arith.constant 0 : i32
    %c0_i32_1 = arith.constant 0 : i32
    return %c0_i32, %c0_i32_0 : i32, i32
  }
  func.func @transform_12(%arg0: i32) -> (i32, i32) {
    %c0_i32 = arith.constant 0 : i32
    %c0_i32_0 = arith.constant 0 : i32
    %c0_i32_1 = arith.constant 0 : i32
    return %c0_i32, %c0_i32_0 : i32, i32
  }
  func.func @transform_13(%arg0: i32) -> (i32, i32) {
    %c0_i32 = arith.constant 0 : i32
    %c0_i32_0 = arith.constant 0 : i32
    %c0_i32_1 = arith.constant 0 : i32
    return %c0_i32, %c0_i32_0 : i32, i32
  }
  func.func @transform_14(%arg0: i32) -> (i32, i32) {
    %c0_i32 = arith.constant 0 : i32
    %c0_i32_0 = arith.constant 0 : i32
    %c0_i32_1 = arith.constant 0 : i32
    return %c0_i32, %c0_i32_0 : i32, i32
  }
  func.func @transform_15(%arg0: i32) -> (i32, i32) {
    %c0_i32 = arith.constant 0 : i32
    %c0_i32_0 = arith.constant 0 : i32
    %c0_i32_1 = arith.constant 0 : i32
    return %c0_i32, %c0_i32_0 : i32, i32
  }
  func.func @transform_16(%arg0: i32) -> (i32, i32) {
    %c0_i32 = arith.constant 0 : i32
    %c0_i32_0 = arith.constant 0 : i32
    %c0_i32_1 = arith.constant 0 : i32
    return %c0_i32, %c0_i32_0 : i32, i32
  }
  func.func @transform_17(%arg0: i32) -> (i32, i32) {
    %c0_i32 = arith.constant 0 : i32
    %c0_i32_0 = arith.constant 0 : i32
    %c0_i32_1 = arith.constant 0 : i32
    return %c0_i32, %c0_i32_0 : i32, i32
  }
  func.func @transform_18(%arg0: i32) -> (i32, i32, i32) {
    %c0_i32 = arith.constant 0 : i32
    %c0_i32_0 = arith.constant 0 : i32
    %c0_i32_1 = arith.constant 0 : i32
    return %arg0, %c0_i32, %c0_i32_0 : i32, i32, i32
  }
}

</mosaic_0001>

<llo_original>
// kernel: tpu_custom_call.1
$region0: #{tpu_custom_call.1}
  #allocation0 [shape = 'u32[]', space=smem, size = 0x4, offset = 0x4, fixed_abs, tag = 'smem constant byte address 0x4 - core index']
  #allocation1 [shape = 'u32[72,128]{1,0:T(1,128)}', space=vmem, size = 0x9000, scoped, tag = 'internal scratch']
  %s0 = inlined_call_operand.hbm [shape: f32[2,8,32], index: 0, kind: input, shape index: {}]
  %s1 = inlined_call_operand.hbm [shape: f32[2,8,32], index: 1, kind: input, shape index: {}]
  %s2 = inlined_call_operand.vmem [shape: f32[32,32], index: 2, kind: input, shape index: {}]
  %s3 = inlined_call_operand.vmem [shape: f32[1,32], index: 3, kind: input, shape index: {}]
  %s4 = inlined_call_operand.vmem [shape: f32[32,32], index: 4, kind: input, shape index: {}]
  %s5 = inlined_call_operand.vmem [shape: f32[1,32], index: 5, kind: input, shape index: {}]
  %s6 = inlined_call_operand.vmem [shape: f32[32,32], index: 6, kind: input, shape index: {}]
  %s7 = inlined_call_operand.vmem [shape: f32[1,32], index: 7, kind: input, shape index: {}]
  %s8 = inlined_call_operand.hbm [shape: f32[32,32], index: 8, kind: input, shape index: {}]
  %s9 = inlined_call_operand.vmem [shape: f32[1,32], index: 9, kind: input, shape index: {}]
  %s10 = inlined_call_operand.vmem [shape: f32[1,32], index: 10, kind: input, shape index: {}]
  %s11 = inlined_call_operand.vmem [shape: f32[1,32], index: 11, kind: input, shape index: {}]
  %s12 = inlined_call_operand.hbm [shape: f32[32,64], index: 12, kind: input, shape index: {}]
  %s13 = inlined_call_operand.vmem [shape: f32[1,64], index: 13, kind: input, shape index: {}]
  %s14 = inlined_call_operand.vmem [shape: f32[64,32], index: 14, kind: input, shape index: {}]
  %s15 = inlined_call_operand.vmem [shape: f32[1,32], index: 15, kind: input, shape index: {}]
  %s16 = inlined_call_operand.vmem [shape: f32[1,32], index: 16, kind: input, shape index: {}]
  %s17 = inlined_call_operand.vmem [shape: f32[1,32], index: 17, kind: input, shape index: {}]
  %s18 = inlined_call_operand.hbm [shape: f32[2,8,32], index: 18, kind: output, shape index: {}]
  %s19 = sld [smem:[#allocation0]]
  $region121: #{tpu_custom_call.1} parent=0
    _
  %s21 = ssub.s32 1, %s19
  %s22 = scalar_select 0, %s21, %s19
  $region1: #{tpu_custom_call.1} parent=0
    #allocation2 [shape = 'u8[8192]{0}', space=vmem, size = 0x2000, scoped, tag = 'input window, operand 0']
    #allocation3 [shape = 's32[2]{0}', space=sflag, size = 0x8, scoped, tag = 'scoped memory for tpu_custom_call.1']
    #allocation4 [shape = 's32[2]{0}', space=sflag, size = 0x8, scoped, tag = 'scoped memory for tpu_custom_call.1']
    #allocation5 [shape = 'u8[8192]{0}', space=vmem, size = 0x2000, scoped, tag = 'input window, operand 1']
    #allocation6 [shape = 's32[2]{0}', space=sflag, size = 0x8, scoped, tag = 'scoped memory for tpu_custom_call.1']
    #allocation7 [shape = 'u8[16384]{0}', space=vmem, size = 0x4000, scoped, tag = 'input window, operand 8, single buffered']
    #allocation8 [shape = 'u8[16384]{0}', space=vmem, size = 0x4000, scoped, tag = 'input window, operand 12, single buffered']
    #allocation9 [shape = 's32[1]{0}', space=sflag, size = 0x4, scoped, tag = 'scoped memory for tpu_custom_call.1']
    #allocation10 [shape = 'u8[8192]{0}', space=vmem, size = 0x2000, scoped, tag = 'output window, operand 0']
    %23 = vsyncpa [#allocation3], 0
    %s24 = scalar_lea.sflag [#allocation3], 1
    %25 = vsyncpa %s24, 0
    %26 = vsyncpa [#allocation6], 0
    %s27 = scalar_lea.sflag [#allocation6], 1
    %28 = vsyncpa %s27, 0
    %29 = vsyncpa [#allocation9], 0
    %30 = vsyncpa [#allocation4], 0
    %s31 = scalar_lea.sflag [#allocation4], 1
    %32 = vsyncpa %s31, 0
    loop: start=0, step=1, limit=4
    $region2: #{tpu_custom_call.1} parent=1 // loop_pre_header
      _
    $region3: #{tpu_custom_call.1} parent=1 // loop_header
      %s34 = sphi 0, %s38
      %p35 = scmp.ge.s32.totalorder %s34, 4
      %s44 = sphi 0, %s46
      %s47 = sphi 0, %s44
      %s48 = sphi 0, %s47
      %s64 = sphi 0, %s48
      %s70 = sphi 0, %s72
      %s73 = sphi 0, %s70
      %s74 = sphi 0, %s73
      %s90 = sphi 0, %s74
      %s94 = sphi 0, %s94
      %s96 = sphi 0, %s94
      %s97 = sphi 0, %s96
      %s111 = sphi 0, %s97
      %s115 = sphi 0, %s115
      %s117 = sphi 0, %s115
      %s118 = sphi 0, %s117
      %s132 = sphi 0, %s118
      %s136 = sphi 0, %s136
      %s138 = sphi 0, %s136
      %s139 = sphi 0, %s138
      %s153 = sphi 0, %s139
      %s157 = sphi 0, %s157
      %s159 = sphi 0, %s157
      %s160 = sphi 0, %s159
      %s174 = sphi 0, %s160
      %s178 = sphi 0, %s178
      %s180 = sphi 0, %s178
      %s181 = sphi 0, %s180
      %s195 = sphi 0, %s181
      %s199 = sphi 0, %s199
      %s201 = sphi 0, %s199
      %s202 = sphi 0, %s201
      %s216 = sphi 0, %s202
      %s220 = sphi 0, %s220
      %s222 = sphi 0, %s220
      %s223 = sphi 0, %s222
      %s237 = sphi 0, %s223
      %s241 = sphi 0, %s241
      %s243 = sphi 0, %s241
      %s244 = sphi 0, %s243
      %s258 = sphi 0, %s244
      %s262 = sphi 0, %s262
      %s264 = sphi 0, %s262
      %s265 = sphi 0, %s264
      %s279 = sphi 0, %s265
      %s283 = sphi 0, %s283
      %s285 = sphi 0, %s283
      %s286 = sphi 0, %s285
      %s300 = sphi 0, %s286
      %s304 = sphi 0, %s304
      %s306 = sphi 0, %s304
      %s307 = sphi 0, %s306
      %s321 = sphi 0, %s307
      %s325 = sphi 0, %s325
      %s327 = sphi 0, %s325
      %s328 = sphi 0, %s327
      %s342 = sphi 0, %s328
      %s346 = sphi 0, %s346
      %s348 = sphi 0, %s346
      %s349 = sphi 0, %s348
      %s363 = sphi 0, %s349
      %s367 = sphi 0, %s367
      %s369 = sphi 0, %s367
      %s370 = sphi 0, %s369
      %s384 = sphi 0, %s370
      %s388 = sphi 0, %s388
      %s390 = sphi 0, %s388
      %s391 = sphi 0, %s390
      %s405 = sphi 0, %s391
      %s409 = sphi 0, %s409
      %s411 = sphi 0, %s409
      %s412 = sphi 0, %s411
      %s426 = sphi 0, %s412
      %s432 = sphi 0, %s434
      %s435 = sphi 0, %s432
      %s436 = sphi 0, %s435
      %s452 = sphi 0, %s436
    $region4: #{tpu_custom_call.1} parent=1 // loop_header_branch
      %37 = sbr.rel (%p35) target = $region8
    $region5: #{tpu_custom_call.1} parent=1 // loop_body
      %s39 = ssub.s32 %s34, 1
      %s40 = ssub.s32 %s34, 2
      %s41 = sadd.s32 %s34, 1
      %s42 = ssub.s32 %s34, %s41
      %p43 = scmp.eq.s32.totalorder %s42, 0
      %s45 = sadd.s32 %s44, 1
      %s46 = scalar_select %p43, %s44, %s45
      %p49 = pneg %p43
      %p50 = scmp.eq.s32.totalorder %s34, 1
      %p51 = por %p49, %p50
      %p52 = scmp.ne.s32.totalorder %s44, %s47
      %p53 = scmp.eq.s32.totalorder %s34, 0
      %p54 = por %p52, %p53
      %p55 = scmp.ne.s32.totalorder %s44, %s47
      %p56 = scmp.eq.s32.totalorder %s39, 1
      %p57 = por %p55, %p56
      %p58 = scmp.ne.s32.totalorder %s47, %s48
      %p59 = scmp.eq.s32.totalorder %s39, 0
      %p60 = por %p58, %p59
      %p61 = scmp.ne.s32.totalorder %s47, %s48
      %p62 = scmp.eq.s32.totalorder %s40, 1
      %p63 = por %p61, %p62
      %p65 = scmp.ne.s32.totalorder %s48, %s64
      %p66 = scmp.eq.s32.totalorder %s40, 0
      %p67 = por %p65, %p66
      %s68 = ssub.s32 %s34, %s41
      %p69 = scmp.eq.s32.totalorder %s68, 0
      %s71 = sadd.s32 %s70, 1
      %s72 = scalar_select %p69, %s70, %s71
      %p75 = pneg %p69
      %p76 = scmp.eq.s32.totalorder %s34, 1
      %p77 = por %p75, %p76
      %p78 = scmp.ne.s32.totalorder %s70, %s73
      %p79 = scmp.eq.s32.totalorder %s34, 0
      %p80 = por %p78, %p79
      %p81 = scmp.ne.s32.totalorder %s70, %s73
      %p82 = scmp.eq.s32.totalorder %s39, 1
      %p83 = por %p81, %p82
      %p84 = scmp.ne.s32.totalorder %s73, %s74
      %p85 = scmp.eq.s32.totalorder %s39, 0
      %p86 = por %p84, %p85
      %p87 = scmp.ne.s32.totalorder %s73, %s74
      %p88 = scmp.eq.s32.totalorder %s40, 1
      %p89 = por %p87, %p88
      %p91 = scmp.ne.s32.totalorder %s74, %s90
      %p92 = scmp.eq.s32.totalorder %s40, 0
      %p93 = por %p91, %p92
      %s95 = sadd.s32 %s94, 1
      %p98 = scmp.eq.s32.totalorder %s34, 1
      %p99 = scmp.ne.s32.totalorder %s94, %s96
      %p100 = scmp.eq.s32.totalorder %s34, 0
      %p101 = por %p99, %p100
      %p102 = scmp.ne.s32.totalorder %s94, %s96
      %p103 = scmp.eq.s32.totalorder %s39, 1
      %p104 = por %p102, %p103
      %p105 = scmp.ne.s32.totalorder %s96, %s97
      %p106 = scmp.eq.s32.totalorder %s39, 0
      %p107 = por %p105, %p106
      %p108 = scmp.ne.s32.totalorder %s96, %s97
      %p109 = scmp.eq.s32.totalorder %s40, 1
      %p110 = por %p108, %p109
      %p112 = scmp.ne.s32.totalorder %s97, %s111
      %p113 = scmp.eq.s32.totalorder %s40, 0
      %p114 = por %p112, %p113
      %s116 = sadd.s32 %s115, 1
      %p119 = scmp.eq.s32.totalorder %s34, 1
      %p120 = scmp.ne.s32.totalorder %s115, %s117
      %p121 = scmp.eq.s32.totalorder %s34, 0
      %p122 = por %p120, %p121
      %p123 = scmp.ne.s32.totalorder %s115, %s117
      %p124 = scmp.eq.s32.totalorder %s39, 1
      %p125 = por %p123, %p124
      %p126 = scmp.ne.s32.totalorder %s117, %s118
      %p127 = scmp.eq.s32.totalorder %s39, 0
      %p128 = por %p126, %p127
      %p129 = scmp.ne.s32.totalorder %s117, %s118
      %p130 = scmp.eq.s32.totalorder %s40, 1
      %p131 = por %p129, %p130
      %p133 = scmp.ne.s32.totalorder %s118, %s132
      %p134 = scmp.eq.s32.totalorder %s40, 0
      %p135 = por %p133, %p134
      %s137 = sadd.s32 %s136, 1
      %p140 = scmp.eq.s32.totalorder %s34, 1
      %p141 = scmp.ne.s32.totalorder %s136, %s138
      %p142 = scmp.eq.s32.totalorder %s34, 0
      %p143 = por %p141, %p142
      %p144 = scmp.ne.s32.totalorder %s136, %s138
      %p145 = scmp.eq.s32.totalorder %s39, 1
      %p146 = por %p144, %p145
      %p147 = scmp.ne.s32.totalorder %s138, %s139
      %p148 = scmp.eq.s32.totalorder %s39, 0
      %p149 = por %p147, %p148
      %p150 = scmp.ne.s32.totalorder %s138, %s139
      %p151 = scmp.eq.s32.totalorder %s40, 1
      %p152 = por %p150, %p151
      %p154 = scmp.ne.s32.totalorder %s139, %s153
      %p155 = scmp.eq.s32.totalorder %s40, 0
      %p156 = por %p154, %p155
      %s158 = sadd.s32 %s157, 1
      %p161 = scmp.eq.s32.totalorder %s34, 1
      %p162 = scmp.ne.s32.totalorder %s157, %s159
      %p163 = scmp.eq.s32.totalorder %s34, 0
      %p164 = por %p162, %p163
      %p165 = scmp.ne.s32.totalorder %s157, %s159
      %p166 = scmp.eq.s32.totalorder %s39, 1
      %p167 = por %p165, %p166
      %p168 = scmp.ne.s32.totalorder %s159, %s160
      %p169 = scmp.eq.s32.totalorder %s39, 0
      %p170 = por %p168, %p169
      %p171 = scmp.ne.s32.totalorder %s159, %s160
      %p172 = scmp.eq.s32.totalorder %s40, 1
      %p173 = por %p171, %p172
      %p175 = scmp.ne.s32.totalorder %s160, %s174
      %p176 = scmp.eq.s32.totalorder %s40, 0
      %p177 = por %p175, %p176
      %s179 = sadd.s32 %s178, 1
      %p182 = scmp.eq.s32.totalorder %s34, 1
      %p183 = scmp.ne.s32.totalorder %s178, %s180
      %p184 = scmp.eq.s32.totalorder %s34, 0
      %p185 = por %p183, %p184
      %p186 = scmp.ne.s32.totalorder %s178, %s180
      %p187 = scmp.eq.s32.totalorder %s39, 1
      %p188 = por %p186, %p187
      %p189 = scmp.ne.s32.totalorder %s180, %s181
      %p190 = scmp.eq.s32.totalorder %s39, 0
      %p191 = por %p189, %p190
      %p192 = scmp.ne.s32.totalorder %s180, %s181
      %p193 = scmp.eq.s32.totalorder %s40, 1
      %p194 = por %p192, %p193
      %p196 = scmp.ne.s32.totalorder %s181, %s195
      %p197 = scmp.eq.s32.totalorder %s40, 0
      %p198 = por %p196, %p197
      %s200 = sadd.s32 %s199, 1
      %p203 = scmp.eq.s32.totalorder %s34, 1
      %p204 = scmp.ne.s32.totalorder %s199, %s201
      %p205 = scmp.eq.s32.totalorder %s34, 0
      %p206 = por %p204, %p205
      %p207 = scmp.ne.s32.totalorder %s199, %s201
      %p208 = scmp.eq.s32.totalorder %s39, 1
      %p209 = por %p207, %p208
      %p210 = scmp.ne.s32.totalorder %s201, %s202
      %p211 = scmp.eq.s32.totalorder %s39, 0
      %p212 = por %p210, %p211
      %p213 = scmp.ne.s32.totalorder %s201, %s202
      %p214 = scmp.eq.s32.totalorder %s40, 1
      %p215 = por %p213, %p214
      %p217 = scmp.ne.s32.totalorder %s202, %s216
      %p218 = scmp.eq.s32.totalorder %s40, 0
      %p219 = por %p217, %p218
      %s221 = sadd.s32 %s220, 1
      %p224 = scmp.eq.s32.totalorder %s34, 1
      %p225 = scmp.ne.s32.totalorder %s220, %s222
      %p226 = scmp.eq.s32.totalorder %s34, 0
      %p227 = por %p225, %p226
      %p228 = scmp.ne.s32.totalorder %s220, %s222
      %p229 = scmp.eq.s32.totalorder %s39, 1
      %p230 = por %p228, %p229
      %p231 = scmp.ne.s32.totalorder %s222, %s223
      %p232 = scmp.eq.s32.totalorder %s39, 0
      %p233 = por %p231, %p232
      %p234 = scmp.ne.s32.totalorder %s222, %s223
      %p235 = scmp.eq.s32.totalorder %s40, 1
      %p236 = por %p234, %p235
      %p238 = scmp.ne.s32.totalorder %s223, %s237
      %p239 = scmp.eq.s32.totalorder %s40, 0
      %p240 = por %p238, %p239
      %s242 = sadd.s32 %s241, 1
      %p245 = scmp.eq.s32.totalorder %s34, 1
      %p246 = scmp.ne.s32.totalorder %s241, %s243
      %p247 = scmp.eq.s32.totalorder %s34, 0
      %p248 = por %p246, %p247
      %p249 = scmp.ne.s32.totalorder %s241, %s243
      %p250 = scmp.eq.s32.totalorder %s39, 1
      %p251 = por %p249, %p250
      %p252 = scmp.ne.s32.totalorder %s243, %s244
      %p253 = scmp.eq.s32.totalorder %s39, 0
      %p254 = por %p252, %p253
      %p255 = scmp.ne.s32.totalorder %s243, %s244
      %p256 = scmp.eq.s32.totalorder %s40, 1
      %p257 = por %p255, %p256
      %p259 = scmp.ne.s32.totalorder %s244, %s258
      %p260 = scmp.eq.s32.totalorder %s40, 0
      %p261 = por %p259, %p260
      %s263 = sadd.s32 %s262, 1
      %p266 = scmp.eq.s32.totalorder %s34, 1
      %p267 = scmp.ne.s32.totalorder %s262, %s264
      %p268 = scmp.eq.s32.totalorder %s34, 0
      %p269 = por %p267, %p268
      %p270 = scmp.ne.s32.totalorder %s262, %s264
      %p271 = scmp.eq.s32.totalorder %s39, 1
      %p272 = por %p270, %p271
      %p273 = scmp.ne.s32.totalorder %s264, %s265
      %p274 = scmp.eq.s32.totalorder %s39, 0
      %p275 = por %p273, %p274
      %p276 = scmp.ne.s32.totalorder %s264, %s265
      %p277 = scmp.eq.s32.totalorder %s40, 1
      %p278 = por %p276, %p277
      %p280 = scmp.ne.s32.totalorder %s265, %s279
      %p281 = scmp.eq.s32.totalorder %s40, 0
      %p282 = por %p280, %p281
      %s284 = sadd.s32 %s283, 1
      %p287 = scmp.eq.s32.totalorder %s34, 1
      %p288 = scmp.ne.s32.totalorder %s283, %s285
      %p289 = scmp.eq.s32.totalorder %s34, 0
      %p290 = por %p288, %p289
      %p291 = scmp.ne.s32.totalorder %s283, %s285
      %p292 = scmp.eq.s32.totalorder %s39, 1
      %p293 = por %p291, %p292
      %p294 = scmp.ne.s32.totalorder %s285, %s286
      %p295 = scmp.eq.s32.totalorder %s39, 0
      %p296 = por %p294, %p295
      %p297 = scmp.ne.s32.totalorder %s285, %s286
      %p298 = scmp.eq.s32.totalorder %s40, 1
      %p299 = por %p297, %p298
      %p301 = scmp.ne.s32.totalorder %s286, %s300
      %p302 = scmp.eq.s32.totalorder %s40, 0
      %p303 = por %p301, %p302
      %s305 = sadd.s32 %s304, 1
      %p308 = scmp.eq.s32.totalorder %s34, 1
      %p309 = scmp.ne.s32.totalorder %s304, %s306
      %p310 = scmp.eq.s32.totalorder %s34, 0
      %p311 = por %p309, %p310
      %p312 = scmp.ne.s32.totalorder %s304, %s306
      %p313 = scmp.eq.s32.totalorder %s39, 1
      %p314 = por %p312, %p313
      %p315 = scmp.ne.s32.totalorder %s306, %s307
      %p316 = scmp.eq.s32.totalorder %s39, 0
      %p317 = por %p315, %p316
      %p318 = scmp.ne.s32.totalorder %s306, %s307
      %p319 = scmp.eq.s32.totalorder %s40, 1
      %p320 = por %p318, %p319
      %p322 = scmp.ne.s32.totalorder %s307, %s321
      %p323 = scmp.eq.s32.totalorder %s40, 0
      %p324 = por %p322, %p323
      %s326 = sadd.s32 %s325, 1
      %p329 = scmp.eq.s32.totalorder %s34, 1
      %p330 = scmp.ne.s32.totalorder %s325, %s327
      %p331 = scmp.eq.s32.totalorder %s34, 0
      %p332 = por %p330, %p331
      %p333 = scmp.ne.s32.totalorder %s325, %s327
      %p334 = scmp.eq.s32.totalorder %s39, 1
      %p335 = por %p333, %p334
      %p336 = scmp.ne.s32.totalorder %s327, %s328
      %p337 = scmp.eq.s32.totalorder %s39, 0
      %p338 = por %p336, %p337
      %p339 = scmp.ne.s32.totalorder %s327, %s328
      %p340 = scmp.eq.s32.totalorder %s40, 1
      %p341 = por %p339, %p340
      %p343 = scmp.ne.s32.totalorder %s328, %s342
      %p344 = scmp.eq.s32.totalorder %s40, 0
      %p345 = por %p343, %p344
      %s347 = sadd.s32 %s346, 1
      %p350 = scmp.eq.s32.totalorder %s34, 1
      %p351 = scmp.ne.s32.totalorder %s346, %s348
      %p352 = scmp.eq.s32.totalorder %s34, 0
      %p353 = por %p351, %p352
      %p354 = scmp.ne.s32.totalorder %s346, %s348
      %p355 = scmp.eq.s32.totalorder %s39, 1
      %p356 = por %p354, %p355
      %p357 = scmp.ne.s32.totalorder %s348, %s349
      %p358 = scmp.eq.s32.totalorder %s39, 0
      %p359 = por %p357, %p358
      %p360 = scmp.ne.s32.totalorder %s348, %s349
      %p361 = scmp.eq.s32.totalorder %s40, 1
      %p362 = por %p360, %p361
      %p364 = scmp.ne.s32.totalorder %s349, %s363
      %p365 = scmp.eq.s32.totalorder %s40, 0
      %p366 = por %p364, %p365
      %s368 = sadd.s32 %s367, 1
      %p371 = scmp.eq.s32.totalorder %s34, 1
      %p372 = scmp.ne.s32.totalorder %s367, %s369
      %p373 = scmp.eq.s32.totalorder %s34, 0
      %p374 = por %p372, %p373
      %p375 = scmp.ne.s32.totalorder %s367, %s369
      %p376 = scmp.eq.s32.totalorder %s39, 1
      %p377 = por %p375, %p376
      %p378 = scmp.ne.s32.totalorder %s369, %s370
      %p379 = scmp.eq.s32.totalorder %s39, 0
      %p380 = por %p378, %p379
      %p381 = scmp.ne.s32.totalorder %s369, %s370
      %p382 = scmp.eq.s32.totalorder %s40, 1
      %p383 = por %p381, %p382
      %p385 = scmp.ne.s32.totalorder %s370, %s384
      %p386 = scmp.eq.s32.totalorder %s40, 0
      %p387 = por %p385, %p386
      %s389 = sadd.s32 %s388, 1
      %p392 = scmp.eq.s32.totalorder %s34, 1
      %p393 = scmp.ne.s32.totalorder %s388, %s390
      %p394 = scmp.eq.s32.totalorder %s34, 0
      %p395 = por %p393, %p394
      %p396 = scmp.ne.s32.totalorder %s388, %s390
      %p397 = scmp.eq.s32.totalorder %s39, 1
      %p398 = por %p396, %p397
      %p399 = scmp.ne.s32.totalorder %s390, %s391
      %p400 = scmp.eq.s32.totalorder %s39, 0
      %p401 = por %p399, %p400
      %p402 = scmp.ne.s32.totalorder %s390, %s391
      %p403 = scmp.eq.s32.totalorder %s40, 1
      %p404 = por %p402, %p403
      %p406 = scmp.ne.s32.totalorder %s391, %s405
      %p407 = scmp.eq.s32.totalorder %s40, 0
      %p408 = por %p406, %p407
      %s410 = sadd.s32 %s409, 1
      %p413 = scmp.eq.s32.totalorder %s34, 1
      %p414 = scmp.ne.s32.totalorder %s409, %s411
      %p415 = scmp.eq.s32.totalorder %s34, 0
      %p416 = por %p414, %p415
      %p417 = scmp.ne.s32.totalorder %s409, %s411
      %p418 = scmp.eq.s32.totalorder %s39, 1
      %p419 = por %p417, %p418
      %p420 = scmp.ne.s32.totalorder %s411, %s412
      %p421 = scmp.eq.s32.totalorder %s39, 0
      %p422 = por %p420, %p421
      %p423 = scmp.ne.s32.totalorder %s411, %s412
      %p424 = scmp.eq.s32.totalorder %s40, 1
      %p425 = por %p423, %p424
      %p427 = scmp.ne.s32.totalorder %s412, %s426
      %p428 = scmp.eq.s32.totalorder %s40, 0
      %p429 = por %p427, %p428
      %s430 = ssub.s32 %s34, %s41
      %p431 = scmp.eq.s32.totalorder %s430, 0
      %s433 = sadd.s32 %s432, 1
      %s434 = scalar_select %p431, %s432, %s433
      %p437 = pneg %p431
      %p438 = scmp.eq.s32.totalorder %s34, 1
      %p439 = por %p437, %p438
      %p440 = scmp.ne.s32.totalorder %s432, %s435
      %p441 = scmp.eq.s32.totalorder %s34, 0
      %p442 = por %p440, %p441
      %p443 = scmp.ne.s32.totalorder %s432, %s435
      %p444 = scmp.eq.s32.totalorder %s39, 1
      %p445 = por %p443, %p444
      %p446 = scmp.ne.s32.totalorder %s435, %s436
      %p447 = scmp.eq.s32.totalorder %s39, 0
      %p448 = por %p446, %p447
      %p449 = scmp.ne.s32.totalorder %s435, %s436
      %p450 = scmp.eq.s32.totalorder %s40, 1
      %p451 = por %p449, %p450
      %p453 = scmp.ne.s32.totalorder %s436, %s452
      %p454 = scmp.eq.s32.totalorder %s40, 0
      %p455 = por %p453, %p454
      %p456 = scmp.le.s32.totalorder 1, %s34
      %p457 = scmp.lt.s32.totalorder %s34, 3
      %p458 = pnand %p456, %p457
      %p459 = pneg %p458
      // Predicated region
      $region9: #{tpu_custom_call.1} parent=5 // pred_check
        _
      $region10: #{tpu_custom_call.1} parent=5 // pred_check_branch
        %461 = sbr.rel (%p458) target = $region12
      $region11: #{tpu_custom_call.1} parent=5 // pred_region
        %s462 = ssub.s32 %s34, 1
        // Predicated region
        $region13: #{tpu_custom_call.1} parent=11 // pred_check
          %p463 = pneg %p107
        $region14: #{tpu_custom_call.1} parent=11 // pred_check_branch
          %465 = sbr.rel (%p463) target = $region16
        $region15: #{tpu_custom_call.1} parent=11 // pred_region
          _
        $region16: #{tpu_custom_call.1} parent=11 // pred_fallthru
          _
        // Predicated region
        $region17: #{tpu_custom_call.1} parent=11 // pred_check
          %p466 = pneg %p128
        $region18: #{tpu_custom_call.1} parent=11 // pred_check_branch
          %468 = sbr.rel (%p466) target = $region20
        $region19: #{tpu_custom_call.1} parent=11 // pred_region
          _
        $region20: #{tpu_custom_call.1} parent=11 // pred_fallthru
          _
        // Predicated region
        $region21: #{tpu_custom_call.1} parent=11 // pred_check
          %p469 = pneg %p149
        $region22: #{tpu_custom_call.1} parent=11 // pred_check_branch
          %471 = sbr.rel (%p469) target = $region24
        $region23: #{tpu_custom_call.1} parent=11 // pred_region
          _
        $region24: #{tpu_custom_call.1} parent=11 // pred_fallthru
          _
        // Predicated region
        $region25: #{tpu_custom_call.1} parent=11 // pred_check
          %p472 = pneg %p170
        $region26: #{tpu_custom_call.1} parent=11 // pred_check_branch
          %474 = sbr.rel (%p472) target = $region28
        $region27: #{tpu_custom_call.1} parent=11 // pred_region
          _
        $region28: #{tpu_custom_call.1} parent=11 // pred_fallthru
          _
        // Predicated region
        $region29: #{tpu_custom_call.1} parent=11 // pred_check
          %p475 = pneg %p191
        $region30: #{tpu_custom_call.1} parent=11 // pred_check_branch
          %477 = sbr.rel (%p475) target = $region32
        $region31: #{tpu_custom_call.1} parent=11 // pred_region
          _
        $region32: #{tpu_custom_call.1} parent=11 // pred_fallthru
          _
        // Predicated region
        $region33: #{tpu_custom_call.1} parent=11 // pred_check
          %p478 = pneg %p212
        $region34: #{tpu_custom_call.1} parent=11 // pred_check_branch
          %480 = sbr.rel (%p478) target = $region36
        $region35: #{tpu_custom_call.1} parent=11 // pred_region
          _
        $region36: #{tpu_custom_call.1} parent=11 // pred_fallthru
          _
        // Predicated region
        $region37: #{tpu_custom_call.1} parent=11 // pred_check
          %p481 = pneg %p233
        $region38: #{tpu_custom_call.1} parent=11 // pred_check_branch
          %483 = sbr.rel (%p481) target = $region40
        $region39: #{tpu_custom_call.1} parent=11 // pred_region
          %485 = vsyncadd [#allocation6], 0
          %s486 = sshll.u32 %s8, 4
          %s487 = int_to_ptr.hbm [resolvable:$true] %s486
          %s488 = sshll.u32 [#allocation7], 4
          %s489 = int_to_ptr.vmem [resolvable:$true] %s488
          %494 = dma.hbm_to_vmem [thread:$0]  %s487, 512, %s489, [#allocation6], 128, 128, 8
        $region40: #{tpu_custom_call.1} parent=11 // pred_fallthru
          _
        // Predicated region
        $region41: #{tpu_custom_call.1} parent=11 // pred_check
          %p495 = pneg %p254
        $region42: #{tpu_custom_call.1} parent=11 // pred_check_branch
          %497 = sbr.rel (%p495) target = $region44
        $region43: #{tpu_custom_call.1} parent=11 // pred_region
          _
        $region44: #{tpu_custom_call.1} parent=11 // pred_fallthru
          _
        // Predicated region
        $region45: #{tpu_custom_call.1} parent=11 // pred_check
          %p498 = pneg %p275
        $region46: #{tpu_custom_call.1} parent=11 // pred_check_branch
          %500 = sbr.rel (%p498) target = $region48
        $region47: #{tpu_custom_call.1} parent=11 // pred_region
          _
        $region48: #{tpu_custom_call.1} parent=11 // pred_fallthru
          _
        // Predicated region
        $region49: #{tpu_custom_call.1} parent=11 // pred_check
          %p501 = pneg %p296
        $region50: #{tpu_custom_call.1} parent=11 // pred_check_branch
          %503 = sbr.rel (%p501) target = $region52
        $region51: #{tpu_custom_call.1} parent=11 // pred_region
          _
        $region52: #{tpu_custom_call.1} parent=11 // pred_fallthru
          _
        // Predicated region
        $region53: #{tpu_custom_call.1} parent=11 // pred_check
          %p504 = pneg %p317
        $region54: #{tpu_custom_call.1} parent=11 // pred_check_branch
          %506 = sbr.rel (%p504) target = $region56
        $region55: #{tpu_custom_call.1} parent=11 // pred_region
          %508 = vsyncadd [#allocation9], 0
          %s509 = sshll.u32 %s12, 4
          %s510 = int_to_ptr.hbm [resolvable:$true] %s509
          %s511 = sshll.u32 [#allocation8], 4
          %s512 = int_to_ptr.vmem [resolvable:$true] %s511
          %517 = dma.hbm_to_vmem [thread:$0]  %s510, 512, %s512, [#allocation9], 128, 128, 8
        $region56: #{tpu_custom_call.1} parent=11 // pred_fallthru
          _
        // Predicated region
        $region57: #{tpu_custom_call.1} parent=11 // pred_check
          %p518 = pneg %p338
        $region58: #{tpu_custom_call.1} parent=11 // pred_check_branch
          %520 = sbr.rel (%p518) target = $region60
        $region59: #{tpu_custom_call.1} parent=11 // pred_region
          _
        $region60: #{tpu_custom_call.1} parent=11 // pred_fallthru
          _
        // Predicated region
        $region61: #{tpu_custom_call.1} parent=11 // pred_check
          %p521 = pneg %p359
        $region62: #{tpu_custom_call.1} parent=11 // pred_check_branch
          %523 = sbr.rel (%p521) target = $region64
        $region63: #{tpu_custom_call.1} parent=11 // pred_region
          _
        $region64: #{tpu_custom_call.1} parent=11 // pred_fallthru
          _
        // Predicated region
        $region65: #{tpu_custom_call.1} parent=11 // pred_check
          %p524 = pneg %p380
        $region66: #{tpu_custom_call.1} parent=11 // pred_check_branch
          %526 = sbr.rel (%p524) target = $region68
        $region67: #{tpu_custom_call.1} parent=11 // pred_region
          _
        $region68: #{tpu_custom_call.1} parent=11 // pred_fallthru
          _
        // Predicated region
        $region69: #{tpu_custom_call.1} parent=11 // pred_check
          %p527 = pneg %p401
        $region70: #{tpu_custom_call.1} parent=11 // pred_check_branch
          %529 = sbr.rel (%p527) target = $region72
        $region71: #{tpu_custom_call.1} parent=11 // pred_region
          _
        $region72: #{tpu_custom_call.1} parent=11 // pred_fallthru
          _
        // Predicated region
        $region73: #{tpu_custom_call.1} parent=11 // pred_check
          %p530 = pneg %p422
        $region74: #{tpu_custom_call.1} parent=11 // pred_check_branch
          %532 = sbr.rel (%p530) target = $region76
        $region75: #{tpu_custom_call.1} parent=11 // pred_region
          _
        $region76: #{tpu_custom_call.1} parent=11 // pred_fallthru
          _
      $region12: #{tpu_custom_call.1} parent=5 // pred_fallthru
        _
      %p533 = scmp.lt.s32.totalorder %s34, 2
      // Predicated region
      $region77: #{tpu_custom_call.1} parent=5 // pred_check
        %p534 = pneg %p533
      $region78: #{tpu_custom_call.1} parent=5 // pred_check_branch
        %536 = sbr.rel (%p534) target = $region80
      $region79: #{tpu_custom_call.1} parent=5 // pred_region
        // Predicated region
        $region81: #{tpu_custom_call.1} parent=79 // pred_check
          %p537 = pneg %p54
        $region82: #{tpu_custom_call.1} parent=79 // pred_check_branch
          %539 = sbr.rel (%p537) target = $region84
        $region83: #{tpu_custom_call.1} parent=79 // pred_region
          %s540 = sand.u32 %s44, 1
          %s541 = scalar_lea.sflag [#allocation3], %s540
          %s542 = sand.u32 %s44, 1
          %s543 = smul.addr %s542, 8
          %s544 = scalar_lea.vmem [#allocation2], %s543
          %546 = vsyncadd %s541, 0
          %s547 = smul.addr %s34, 8
          %s548 = scalar_lea.hbm %s0, %s547
          %s550 = sshll.u32 %s548, 4
          %s551 = int_to_ptr.hbm [resolvable:$true] %s550
          %s552 = sshll.u32 %s544, 4
          %s553 = int_to_ptr.vmem [resolvable:$true] %s552
          %555 = dma.hbm_to_vmem [thread:$0]  %s551, 128, %s553, %s541
        $region84: #{tpu_custom_call.1} parent=79 // pred_fallthru
          _
        // Predicated region
        $region85: #{tpu_custom_call.1} parent=79 // pred_check
          %p556 = pneg %p80
        $region86: #{tpu_custom_call.1} parent=79 // pred_check_branch
          %558 = sbr.rel (%p556) target = $region88
        $region87: #{tpu_custom_call.1} parent=79 // pred_region
          %s559 = sand.u32 %s34, 1
          %s560 = scalar_lea.sflag [#allocation6], %s559
          %s561 = sand.u32 %s70, 1
          %s562 = smul.addr %s561, 8
          %s563 = scalar_lea.vmem [#allocation5], %s562
          %565 = vsyncadd %s560, 0
          %s566 = smul.addr %s34, 8
          %s567 = scalar_lea.hbm %s1, %s566
          %s569 = sshll.u32 %s567, 4
          %s570 = int_to_ptr.hbm [resolvable:$true] %s569
          %s571 = sshll.u32 %s563, 4
          %s572 = int_to_ptr.vmem [resolvable:$true] %s571
          %574 = dma.hbm_to_vmem [thread:$0]  %s570, 128, %s572, %s560
        $region88: #{tpu_custom_call.1} parent=79 // pred_fallthru
          _
      $region80: #{tpu_custom_call.1} parent=5 // pred_fallthru
        _
      %p575 = scmp.le.s32.totalorder 1, %s34
      %p576 = scmp.lt.s32.totalorder %s34, 3
      %p577 = pnand %p575, %p576
      %p578 = pneg %p577
      // Predicated region
      $region89: #{tpu_custom_call.1} parent=5 // pred_check
        _
      $region90: #{tpu_custom_call.1} parent=5 // pred_check_branch
        %580 = sbr.rel (%p577) target = $region92
      $region91: #{tpu_custom_call.1} parent=5 // pred_region
        %s581 = ssub.s32 %s34, 1
        %s582 = sand.u32 %s47, 1
        %s583 = scalar_lea.sflag [#allocation3], %s582
        %s584 = sand.u32 %s47, 1
        %s585 = smul.addr %s584, 8
        %s586 = scalar_lea.vmem [#allocation2], %s585
        // Predicated region
        $region93: #{tpu_custom_call.1} parent=91 // pred_check
          %p587 = pneg %p60
        $region94: #{tpu_custom_call.1} parent=91 // pred_check_branch
          %589 = sbr.rel (%p587) target = $region96
        $region95: #{tpu_custom_call.1} parent=91 // pred_region
          %591 = dma.done %s583, 128
        $region96: #{tpu_custom_call.1} parent=91 // pred_fallthru
          _
        %s592 = sand.u32 %s39, 1
        %s593 = scalar_lea.sflag [#allocation6], %s592
        %s594 = sand.u32 %s73, 1
        %s595 = smul.addr %s594, 8
        %s596 = scalar_lea.vmem [#allocation5], %s595
        // Predicated region
        $region97: #{tpu_custom_call.1} parent=91 // pred_check
          %p597 = pneg %p86
        $region98: #{tpu_custom_call.1} parent=91 // pred_check_branch
          %599 = sbr.rel (%p597) target = $region100
        $region99: #{tpu_custom_call.1} parent=91 // pred_region
          %601 = dma.done %s593, 128
        $region100: #{tpu_custom_call.1} parent=91 // pred_fallthru
          _
        // Predicated region
        $region101: #{tpu_custom_call.1} parent=91 // pred_check
          %p602 = pneg %p233
        $region102: #{tpu_custom_call.1} parent=91 // pred_check_branch
          %604 = sbr.rel (%p602) target = $region104
        $region103: #{tpu_custom_call.1} parent=91 // pred_region
          %606 = dma.done [#allocation6], 512
        $region104: #{tpu_custom_call.1} parent=91 // pred_fallthru
          _
        // Predicated region
        $region105: #{tpu_custom_call.1} parent=91 // pred_check
          %p607 = pneg %p317
        $region106: #{tpu_custom_call.1} parent=91 // pred_check_branch
          %609 = sbr.rel (%p607) target = $region108
        $region107: #{tpu_custom_call.1} parent=91 // pred_region
          %611 = dma.done [#allocation9], 512
        $region108: #{tpu_custom_call.1} parent=91 // pred_fallthru
          _
        %s612 = sand.u32 %s47, 1
        %s613 = scalar_lea.sflag [#allocation3], %s612
        %s614 = sand.u32 %s47, 1
        %s615 = smul.addr %s614, 8
        %s616 = scalar_lea.vmem [#allocation2], %s615
        %p617 = pneg %p60
        %p618 = pneg %p57
        %s619 = sand.u32 %s39, 1
        %s620 = scalar_lea.sflag [#allocation6], %s619
        %s621 = sand.u32 %s73, 1
        %s622 = smul.addr %s621, 8
        %s623 = scalar_lea.vmem [#allocation5], %s622
        %p624 = pneg %p86
        %p625 = pneg %p83
        %p626 = pneg %p107
        %p627 = pneg %p104
        %p628 = pneg %p128
        %p629 = pneg %p125
        %p630 = pneg %p149
        %p631 = pneg %p146
        %p632 = pneg %p170
        %p633 = pneg %p167
        %p634 = pneg %p191
        %p635 = pneg %p188
        %p636 = pneg %p212
        %p637 = pneg %p209
        %p638 = pneg %p233
        %p639 = pneg %p230
        %p640 = pneg %p254
        %p641 = pneg %p251
        %p642 = pneg %p275
        %p643 = pneg %p272
        %p644 = pneg %p296
        %p645 = pneg %p293
        %p646 = pneg %p317
        %p647 = pneg %p314
        %p648 = pneg %p338
        %p649 = pneg %p335
        %p650 = pneg %p359
        %p651 = pneg %p356
        %p652 = pneg %p380
        %p653 = pneg %p377
        %p654 = pneg %p401
        %p655 = pneg %p398
        %p656 = pneg %p422
        %p657 = pneg %p419
        %p658 = pneg %p448
        %p659 = pneg %p445
        %s660 = sand.u32 %s435, 1
        %s661 = scalar_lea.sflag [#allocation4], %s660
        %s662 = sand.u32 %s435, 1
        %s663 = smul.addr %s662, 8
        %s664 = scalar_lea.vmem [#allocation10], %s663
        %v665 = vld [vmem:[%s586] sm:$0xff]
        %v666 = vld [vmem:[%s596] sm:$0xff]
        %v667 = vld [vmem:[%s2] sm:$0xff]
        %v668 = vld [vmem:[%s2 + $0x8] sm:$0xff]
        %v669 = vld [vmem:[%s2 + $0x10] sm:$0xff]
        %v670 = vld [vmem:[%s2 + $0x18] sm:$0xff]
        %v671 = vld [vmem:[%s3] sm:$0x1]
        %v673 = vperm.slane %v671, 0
        %vm675 = vcmask 261120
        %v677 = vsel %vm675, %v665, 0
        %679 = vmatpush.msra.mxu0 0.0
        %680 = vmatpush.msra.mxu0 0.0
        %681 = vmatpush.msra.mxu0 0.0
        %682 = vmatpush.msra.mxu0 0.0
        %683 = vmatpush.msra.mxu0 0.0
        %684 = vmatpush.msra.mxu0 0.0
        %685 = vmatpush.msra.mxu0 0.0
        %686 = vmatpush.msra.mxu0 0.0
        %687 = vmatpush.msra.mxu0 0.0
        %688 = vmatpush.msra.mxu0 0.0
        %689 = vmatpush.msra.mxu0 0.0
        %690 = vmatpush.msra.mxu0 0.0
        %691 = vmatpush.msra.mxu0 %v670
        %692 = vmatpush.msra.mxu0 %v669
        %693 = vmatpush.msra.mxu0 %v668
        %694 = vmatpush.msra.mxu0 %v667
        %695 = vmatmul.f32.gmra.mxu0 %v677
        %v696 = vpop.f32.mrf.mxu0
        %v697 = vadd.f32 %v673, %v696
        %698 = vdwg.mxu0
        %v699 = vld [vmem:[%s4] sm:$0xff]
        %v700 = vld [vmem:[%s4 + $0x8] sm:$0xff]
        %v701 = vld [vmem:[%s4 + $0x10] sm:$0xff]
        %v702 = vld [vmem:[%s4 + $0x18] sm:$0xff]
        %v703 = vld [vmem:[%s5] sm:$0x1]
        %v705 = vperm.slane %v703, 0
        %v708 = vsel %vm675, %v666, 0
        %710 = vmatpush.msra.mxu0 0.0
        %711 = vmatpush.msra.mxu0 0.0
        %712 = vmatpush.msra.mxu0 0.0
        %713 = vmatpush.msra.mxu0 0.0
        %714 = vmatpush.msra.mxu0 0.0
        %715 = vmatpush.msra.mxu0 0.0
        %716 = vmatpush.msra.mxu0 0.0
        %717 = vmatpush.msra.mxu0 0.0
        %718 = vmatpush.msra.mxu0 0.0
        %719 = vmatpush.msra.mxu0 0.0
        %720 = vmatpush.msra.mxu0 0.0
        %721 = vmatpush.msra.mxu0 0.0
        %722 = vmatpush.msra.mxu0 %v702
        %723 = vmatpush.msra.mxu0 %v701
        %724 = vmatpush.msra.mxu0 %v700
        %725 = vmatpush.msra.mxu0 %v699
        %726 = vmatmul.f32.gmra.mxu0 %v708
        %v727 = vpop.f32.mrf.mxu0
        %v728 = vadd.f32 %v705, %v727
        %729 = vdwg.mxu0
        %v730 = vld [vmem:[%s6] sm:$0xff]
        %v731 = vld [vmem:[%s6 + $0x8] sm:$0xff]
        %v732 = vld [vmem:[%s6 + $0x10] sm:$0xff]
        %v733 = vld [vmem:[%s6 + $0x18] sm:$0xff]
        %v734 = vld [vmem:[%s7] sm:$0x1]
        %v736 = vperm.slane %v734, 0
        %738 = vmatpush.msra.mxu0 0.0
        %739 = vmatpush.msra.mxu0 0.0
        %740 = vmatpush.msra.mxu0 0.0
        %741 = vmatpush.msra.mxu0 0.0
        %742 = vmatpush.msra.mxu0 0.0
        %743 = vmatpush.msra.mxu0 0.0
        %744 = vmatpush.msra.mxu0 0.0
        %745 = vmatpush.msra.mxu0 0.0
        %746 = vmatpush.msra.mxu0 0.0
        %747 = vmatpush.msra.mxu0 0.0
        %748 = vmatpush.msra.mxu0 0.0
        %749 = vmatpush.msra.mxu0 0.0
        %750 = vmatpush.msra.mxu0 %v733
        %751 = vmatpush.msra.mxu0 %v732
        %752 = vmatpush.msra.mxu0 %v731
        %753 = vmatpush.msra.mxu0 %v730
        %754 = vmatmul.f32.gmra.mxu0 %v708
        %v755 = vpop.f32.mrf.mxu0
        %v756 = vadd.f32 %v736, %v755
        %757 = vdwg.mxu0
        %vm758 = vcmask 64512
        %v760 = vsel %vm758, %v697, 0
        %v763 = vsel %vm758, %v728, 0
        %765 = vmatpush.xpose.msra.mxu0 0.0
        %766 = vmatpush.xpose.msra.mxu0 0.0
        %767 = vmatpush.xpose.msra.mxu0 0.0
        %768 = vmatpush.xpose.msra.mxu0 0.0
        %769 = vmatpush.xpose.msra.mxu0 0.0
        %770 = vmatpush.xpose.msra.mxu0 0.0
        %771 = vmatpush.xpose.msra.mxu0 0.0
        %772 = vmatpush.xpose.msra.mxu0 0.0
        %773 = vmatpush.xpose.msra.mxu0 0.0
        %774 = vmatpush.xpose.msra.mxu0 0.0
        %775 = vmatpush.xpose.msra.mxu0 0.0
        %776 = vmatpush.xpose.msra.mxu0 0.0
        %777 = vmatpush.xpose.msra.mxu0 0.0
        %778 = vmatpush.xpose.msra.mxu0 0.0
        %779 = vmatpush.xpose.msra.mxu0 0.0
        %780 = vmatpush.xpose.msra.mxu0 %v763
        %781 = vmatmul.f32.gmra.mxu0 %v760
        %v782 = vpop.f32.mrf.mxu0
        %v783 = vadd.f32 0.0, %v782
        %784 = vdwg.mxu0
        %v785 = vsel %vm758, %v783, -inf
        %786 = vmax.xlane.f32.xlu0 %v785
        %v787 = vpop.xlane.xlu0 %786
        %v788 = vsub.f32 %v783, %v787
        %v789 = vmul.f32 %v788, 1.442695
        %v790 = vpow.pop %v789
        %v791 = vsel %vm758, %v790, 0.0
        %792 = vadd.xlane.f32.xlu0 %v791
        %v793 = vpop.xlane.xlu0 %792
        %v794 = vrcp.pop %v793
        %v795 = vmul.f32 %v793, %v794
        %v796 = vsub.f32 1.0, %v795
        %v797 = vmul.f32 %v794, %v796
        %v798 = vadd.f32 %v794, %v797
        %vm799 = vweird.f32 %v793
        %vm800 = vweird.f32 %v794
        %vm801 = vmor %vm799, %vm800
        %v802 = vsel %vm801, %v794, %v798
        %v803 = vand.u32 2147483647, %v793
        %vm804 = vcmp.eq.f32.partialorder %v803, 8.507059e+37
        %v805 = vand.u32 %v793, 2147483648
        %v806 = vor.u32 1.1754944e-38, %v805
        %v807 = vsel %vm804, %v806, %v802
        %v808 = vmul.f32 %v790, %v807
        %v810 = vsel %vm758, %v808, 0
        %812 = vmatpush.msra.mxu0 0.0
        %813 = vmatpush.msra.mxu0 0.0
        %814 = vmatpush.msra.mxu0 0.0
        %815 = vmatpush.msra.mxu0 0.0
        %816 = vmatpush.msra.mxu0 0.0
        %817 = vmatpush.msra.mxu0 0.0
        %818 = vmatpush.msra.mxu0 0.0
        %819 = vmatpush.msra.mxu0 0.0
        %820 = vmatpush.msra.mxu0 0.0
        %821 = vmatpush.msra.mxu0 0.0
        %822 = vmatpush.msra.mxu0 0.0
        %823 = vmatpush.msra.mxu0 0.0
        %824 = vmatpush.msra.mxu0 0.0
        %825 = vmatpush.msra.mxu0 0.0
        %826 = vmatpush.msra.mxu0 0.0
        %827 = vmatpush.msra.mxu0 %v756
        %828 = vmatmul.f32.gmra.mxu0 %v810
        %v829 = vpop.f32.mrf.mxu0
        %v830 = vadd.f32 0.0, %v829
        %831 = vdwg.mxu0
        %v832 = vld [vmem:[#allocation7] sm:$0xff]
        %833 = vrot.lane.b32.xlu0 %v697, 120
        %v834 = vpop.permute.xlu0 %833
        %835 = vrot.lane.b32.xlu0 %v728, 120
        %v836 = vpop.permute.xlu0 %835
        %v837 = vsel %vm758, %v834, 0
        %v839 = vsel %vm758, %v836, 0
        %841 = vmatpush.xpose.msra.mxu0 0.0
        %842 = vmatpush.xpose.msra.mxu0 0.0
        %843 = vmatpush.xpose.msra.mxu0 0.0
        %844 = vmatpush.xpose.msra.mxu0 0.0
        %845 = vmatpush.xpose.msra.mxu0 0.0
        %846 = vmatpush.xpose.msra.mxu0 0.0
        %847 = vmatpush.xpose.msra.mxu0 0.0
        %848 = vmatpush.xpose.msra.mxu0 0.0
        %849 = vmatpush.xpose.msra.mxu0 0.0
        %850 = vmatpush.xpose.msra.mxu0 0.0
        %851 = vmatpush.xpose.msra.mxu0 0.0
        %852 = vmatpush.xpose.msra.mxu0 0.0
        %853 = vmatpush.xpose.msra.mxu0 0.0
        %854 = vmatpush.xpose.msra.mxu0 0.0
        %855 = vmatpush.xpose.msra.mxu0 0.0
        %856 = vmatpush.xpose.msra.mxu0 %v839
        %857 = vmatmul.f32.gmra.mxu0 %v837
        %v858 = vpop.f32.mrf.mxu0
        %v859 = vadd.f32 0.0, %v858
        %860 = vdwg.mxu0
        %v861 = vsel %vm758, %v859, -inf
        %862 = vmax.xlane.f32.xlu0 %v861
        %v863 = vpop.xlane.xlu0 %862
        %v864 = vsub.f32 %v859, %v863
        %v865 = vmul.f32 %v864, 1.442695
        %v866 = vpow.pop %v865
        %v867 = vsel %vm758, %v866, 0.0
        %868 = vadd.xlane.f32.xlu0 %v867
        %v869 = vpop.xlane.xlu0 %868
        %v870 = vrcp.pop %v869
        %v871 = vmul.f32 %v869, %v870
        %v872 = vsub.f32 1.0, %v871
        %v873 = vmul.f32 %v870, %v872
        %v874 = vadd.f32 %v870, %v873
        %vm875 = vweird.f32 %v869
        %vm876 = vweird.f32 %v870
        %vm877 = vmor %vm875, %vm876
        %v878 = vsel %vm877, %v870, %v874
        %v879 = vand.u32 2147483647, %v869
        %vm880 = vcmp.eq.f32.partialorder %v879, 8.507059e+37
        %v881 = vand.u32 %v869, 2147483648
        %v882 = vor.u32 1.1754944e-38, %v881
        %v883 = vsel %vm880, %v882, %v878
        %v884 = vmul.f32 %v866, %v883
        %886 = vrot.lane.b32.xlu0 %v756, 120
        %v887 = vpop.permute.xlu0 %886
        %v890 = vsel %vm758, %v884, 0
        %892 = vmatpush.msra.mxu0 0.0
        %893 = vmatpush.msra.mxu0 0.0
        %894 = vmatpush.msra.mxu0 0.0
        %895 = vmatpush.msra.mxu0 0.0
        %896 = vmatpush.msra.mxu0 0.0
        %897 = vmatpush.msra.mxu0 0.0
        %898 = vmatpush.msra.mxu0 0.0
        %899 = vmatpush.msra.mxu0 0.0
        %900 = vmatpush.msra.mxu0 0.0
        %901 = vmatpush.msra.mxu0 0.0
        %902 = vmatpush.msra.mxu0 0.0
        %903 = vmatpush.msra.mxu0 0.0
        %904 = vmatpush.msra.mxu0 0.0
        %905 = vmatpush.msra.mxu0 0.0
        %906 = vmatpush.msra.mxu0 0.0
        %907 = vmatpush.msra.mxu0 %v887
        %908 = vmatmul.f32.gmra.mxu0 %v890
        %v909 = vpop.f32.mrf.mxu0
        %v910 = vadd.f32 0.0, %v909
        %911 = vdwg.mxu0
        %v912 = vld [vmem:[#allocation7 + $0x8] sm:$0xff]
        %v914 = vsel %vm758, %v910, 0
        %916 = vmatpush.msra.mxu0 0.0
        %917 = vmatpush.msra.mxu0 0.0
        %918 = vmatpush.msra.mxu0 0.0
        %919 = vmatpush.msra.mxu0 0.0
        %920 = vmatpush.msra.mxu0 0.0
        %921 = vmatpush.msra.mxu0 0.0
        %922 = vmatpush.msra.mxu0 0.0
        %923 = vmatpush.msra.mxu0 0.0
        %924 = vmatpush.msra.mxu0 0.0
        %925 = vmatpush.msra.mxu0 0.0
        %926 = vmatpush.msra.mxu0 0.0
        %927 = vmatpush.msra.mxu0 0.0
        %928 = vmatpush.msra.mxu0 0.0
        %929 = vmatpush.msra.mxu0 0.0
        %930 = vmatpush.msra.mxu0 0.0
        %931 = vmatpush.msra.mxu0 %v912
        %932 = vmatmul.f32.gmra.mxu0 %v914
        %v933 = vpop.f32.mrf.mxu0
        %v934 = vadd.f32 0.0, %v933
        %935 = vdwg.mxu0
        %v937 = vsel %vm758, %v830, 0
        %939 = vmatpush.msra.mxu0 0.0
        %940 = vmatpush.msra.mxu0 0.0
        %941 = vmatpush.msra.mxu0 0.0
        %942 = vmatpush.msra.mxu0 0.0
        %943 = vmatpush.msra.mxu0 0.0
        %944 = vmatpush.msra.mxu0 0.0
        %945 = vmatpush.msra.mxu0 0.0
        %946 = vmatpush.msra.mxu0 0.0
        %947 = vmatpush.msra.mxu0 0.0
        %948 = vmatpush.msra.mxu0 0.0
        %949 = vmatpush.msra.mxu0 0.0
        %950 = vmatpush.msra.mxu0 0.0
        %951 = vmatpush.msra.mxu0 0.0
        %952 = vmatpush.msra.mxu0 0.0
        %953 = vmatpush.msra.mxu0 0.0
        %954 = vmatpush.msra.mxu0 %v832
        %955 = vmatmul.f32.gmra.mxu0 %v937
        %v956 = vpop.f32.mrf.mxu0
        %v957 = vadd.f32 %v934, %v956
        %958 = vdwg.mxu0
        %959 = vrot.lane.b32.xlu0 %v697, 112
        %v960 = vpop.permute.xlu0 %959
        %961 = vrot.lane.b32.xlu0 %v728, 112
        %v962 = vpop.permute.xlu0 %961
        %v963 = vsel %vm758, %v960, 0
        %v965 = vsel %vm758, %v962, 0
        %967 = vmatpush.xpose.msra.mxu0 0.0
        %968 = vmatpush.xpose.msra.mxu0 0.0
        %969 = vmatpush.xpose.msra.mxu0 0.0
        %970 = vmatpush.xpose.msra.mxu0 0.0
        %971 = vmatpush.xpose.msra.mxu0 0.0
        %972 = vmatpush.xpose.msra.mxu0 0.0
        %973 = vmatpush.xpose.msra.mxu0 0.0
        %974 = vmatpush.xpose.msra.mxu0 0.0
        %975 = vmatpush.xpose.msra.mxu0 0.0
        %976 = vmatpush.xpose.msra.mxu0 0.0
        %977 = vmatpush.xpose.msra.mxu0 0.0
        %978 = vmatpush.xpose.msra.mxu0 0.0
        %979 = vmatpush.xpose.msra.mxu0 0.0
        %980 = vmatpush.xpose.msra.mxu0 0.0
        %981 = vmatpush.xpose.msra.mxu0 0.0
        %982 = vmatpush.xpose.msra.mxu0 %v965
        %983 = vmatmul.f32.gmra.mxu0 %v963
        %v984 = vpop.f32.mrf.mxu0
        %v985 = vadd.f32 0.0, %v984
        %986 = vdwg.mxu0
        %v987 = vsel %vm758, %v985, -inf
        %988 = vmax.xlane.f32.xlu0 %v987
        %v989 = vpop.xlane.xlu0 %988
        %v990 = vsub.f32 %v985, %v989
        %v991 = vmul.f32 %v990, 1.442695
        %v992 = vpow.pop %v991
        %v993 = vsel %vm758, %v992, 0.0
        %994 = vadd.xlane.f32.xlu0 %v993
        %v995 = vpop.xlane.xlu0 %994
        %v996 = vrcp.pop %v995
        %v997 = vmul.f32 %v995, %v996
        %v998 = vsub.f32 1.0, %v997
        %v999 = vmul.f32 %v996, %v998
        %v1000 = vadd.f32 %v996, %v999
        %vm1001 = vweird.f32 %v995
        %vm1002 = vweird.f32 %v996
        %vm1003 = vmor %vm1001, %vm1002
        %v1004 = vsel %vm1003, %v996, %v1000
        %v1005 = vand.u32 2147483647, %v995
        %vm1006 = vcmp.eq.f32.partialorder %v1005, 8.507059e+37
        %v1007 = vand.u32 %v995, 2147483648
        %v1008 = vor.u32 1.1754944e-38, %v1007
        %v1009 = vsel %vm1006, %v1008, %v1004
        %v1010 = vmul.f32 %v992, %v1009
        %1011 = vrot.lane.b32.xlu0 %v756, 112
        %v1012 = vpop.permute.xlu0 %1011
        %v1015 = vsel %vm758, %v1010, 0
        %1017 = vmatpush.msra.mxu0 0.0
        %1018 = vmatpush.msra.mxu0 0.0
        %1019 = vmatpush.msra.mxu0 0.0
        %1020 = vmatpush.msra.mxu0 0.0
        %1021 = vmatpush.msra.mxu0 0.0
        %1022 = vmatpush.msra.mxu0 0.0
        %1023 = vmatpush.msra.mxu0 0.0
        %1024 = vmatpush.msra.mxu0 0.0
        %1025 = vmatpush.msra.mxu0 0.0
        %1026 = vmatpush.msra.mxu0 0.0
        %1027 = vmatpush.msra.mxu0 0.0
        %1028 = vmatpush.msra.mxu0 0.0
        %1029 = vmatpush.msra.mxu0 0.0
        %1030 = vmatpush.msra.mxu0 0.0
        %1031 = vmatpush.msra.mxu0 0.0
        %1032 = vmatpush.msra.mxu0 %v1012
        %1033 = vmatmul.f32.gmra.mxu0 %v1015
        %v1034 = vpop.f32.mrf.mxu0
        %v1035 = vadd.f32 0.0, %v1034
        %1036 = vdwg.mxu0
        %v1037 = vld [vmem:[#allocation7 + $0x10] sm:$0xff]
        %v1039 = vsel %vm758, %v1035, 0
        %1041 = vmatpush.msra.mxu0 0.0
        %1042 = vmatpush.msra.mxu0 0.0
        %1043 = vmatpush.msra.mxu0 0.0
        %1044 = vmatpush.msra.mxu0 0.0
        %1045 = vmatpush.msra.mxu0 0.0
        %1046 = vmatpush.msra.mxu0 0.0
        %1047 = vmatpush.msra.mxu0 0.0
        %1048 = vmatpush.msra.mxu0 0.0
        %1049 = vmatpush.msra.mxu0 0.0
        %1050 = vmatpush.msra.mxu0 0.0
        %1051 = vmatpush.msra.mxu0 0.0
        %1052 = vmatpush.msra.mxu0 0.0
        %1053 = vmatpush.msra.mxu0 0.0
        %1054 = vmatpush.msra.mxu0 0.0
        %1055 = vmatpush.msra.mxu0 0.0
        %1056 = vmatpush.msra.mxu0 %v1037
        %1057 = vmatmul.f32.gmra.mxu0 %v1039
        %v1058 = vpop.f32.mrf.mxu0
        %v1059 = vadd.f32 0.0, %v1058
        %1060 = vdwg.mxu0
        %v1061 = vadd.f32 %v957, %v1059
        %1062 = vrot.lane.b32.xlu0 %v697, 104
        %v1063 = vpop.permute.xlu0 %1062
        %1064 = vrot.lane.b32.xlu0 %v728, 104
        %v1065 = vpop.permute.xlu0 %1064
        %v1066 = vsel %vm758, %v1063, 0
        %v1068 = vsel %vm758, %v1065, 0
        %1070 = vmatpush.xpose.msra.mxu0 0.0
        %1071 = vmatpush.xpose.msra.mxu0 0.0
        %1072 = vmatpush.xpose.msra.mxu0 0.0
        %1073 = vmatpush.xpose.msra.mxu0 0.0
        %1074 = vmatpush.xpose.msra.mxu0 0.0
        %1075 = vmatpush.xpose.msra.mxu0 0.0
        %1076 = vmatpush.xpose.msra.mxu0 0.0
        %1077 = vmatpush.xpose.msra.mxu0 0.0
        %1078 = vmatpush.xpose.msra.mxu0 0.0
        %1079 = vmatpush.xpose.msra.mxu0 0.0
        %1080 = vmatpush.xpose.msra.mxu0 0.0
        %1081 = vmatpush.xpose.msra.mxu0 0.0
        %1082 = vmatpush.xpose.msra.mxu0 0.0
        %1083 = vmatpush.xpose.msra.mxu0 0.0
        %1084 = vmatpush.xpose.msra.mxu0 0.0
        %1085 = vmatpush.xpose.msra.mxu0 %v1068
        %1086 = vmatmul.f32.gmra.mxu0 %v1066
        %v1087 = vpop.f32.mrf.mxu0
        %v1088 = vadd.f32 0.0, %v1087
        %1089 = vdwg.mxu0
        %v1090 = vsel %vm758, %v1088, -inf
        %1091 = vmax.xlane.f32.xlu0 %v1090
        %v1092 = vpop.xlane.xlu0 %1091
        %v1093 = vsub.f32 %v1088, %v1092
        %v1094 = vmul.f32 %v1093, 1.442695
        %v1095 = vpow.pop %v1094
        %v1096 = vsel %vm758, %v1095, 0.0
        %1097 = vadd.xlane.f32.xlu0 %v1096
        %v1098 = vpop.xlane.xlu0 %1097
        %v1099 = vrcp.pop %v1098
        %v1100 = vmul.f32 %v1098, %v1099
        %v1101 = vsub.f32 1.0, %v1100
        %v1102 = vmul.f32 %v1099, %v1101
        %v1103 = vadd.f32 %v1099, %v1102
        %vm1104 = vweird.f32 %v1098
        %vm1105 = vweird.f32 %v1099
        %vm1106 = vmor %vm1104, %vm1105
        %v1107 = vsel %vm1106, %v1099, %v1103
        %v1108 = vand.u32 2147483647, %v1098
        %vm1109 = vcmp.eq.f32.partialorder %v1108, 8.507059e+37
        %v1110 = vand.u32 %v1098, 2147483648
        %v1111 = vor.u32 1.1754944e-38, %v1110
        %v1112 = vsel %vm1109, %v1111, %v1107
        %v1113 = vmul.f32 %v1095, %v1112
        %1114 = vrot.lane.b32.xlu0 %v756, 104
        %v1115 = vpop.permute.xlu0 %1114
        %v1118 = vsel %vm758, %v1113, 0
        %1120 = vmatpush.msra.mxu0 0.0
        %1121 = vmatpush.msra.mxu0 0.0
        %1122 = vmatpush.msra.mxu0 0.0
        %1123 = vmatpush.msra.mxu0 0.0
        %1124 = vmatpush.msra.mxu0 0.0
        %1125 = vmatpush.msra.mxu0 0.0
        %1126 = vmatpush.msra.mxu0 0.0
        %1127 = vmatpush.msra.mxu0 0.0
        %1128 = vmatpush.msra.mxu0 0.0
        %1129 = vmatpush.msra.mxu0 0.0
        %1130 = vmatpush.msra.mxu0 0.0
        %1131 = vmatpush.msra.mxu0 0.0
        %1132 = vmatpush.msra.mxu0 0.0
        %1133 = vmatpush.msra.mxu0 0.0
        %1134 = vmatpush.msra.mxu0 0.0
        %1135 = vmatpush.msra.mxu0 %v1115
        %1136 = vmatmul.f32.gmra.mxu0 %v1118
        %v1137 = vpop.f32.mrf.mxu0
        %v1138 = vadd.f32 0.0, %v1137
        %1139 = vdwg.mxu0
        %v1140 = vld [vmem:[#allocation7 + $0x18] sm:$0xff]
        %v1142 = vsel %vm758, %v1138, 0
        %1144 = vmatpush.msra.mxu0 0.0
        %1145 = vmatpush.msra.mxu0 0.0
        %1146 = vmatpush.msra.mxu0 0.0
        %1147 = vmatpush.msra.mxu0 0.0
        %1148 = vmatpush.msra.mxu0 0.0
        %1149 = vmatpush.msra.mxu0 0.0
        %1150 = vmatpush.msra.mxu0 0.0
        %1151 = vmatpush.msra.mxu0 0.0
        %1152 = vmatpush.msra.mxu0 0.0
        %1153 = vmatpush.msra.mxu0 0.0
        %1154 = vmatpush.msra.mxu0 0.0
        %1155 = vmatpush.msra.mxu0 0.0
        %1156 = vmatpush.msra.mxu0 0.0
        %1157 = vmatpush.msra.mxu0 0.0
        %1158 = vmatpush.msra.mxu0 0.0
        %1159 = vmatpush.msra.mxu0 %v1140
        %1160 = vmatmul.f32.gmra.mxu0 %v1142
        %v1161 = vpop.f32.mrf.mxu0
        %v1162 = vadd.f32 0.0, %v1161
        %1163 = vdwg.mxu0
        %v1164 = vadd.f32 %v1061, %v1162
        %v1165 = vld [vmem:[%s9] sm:$0x1]
        %v1167 = vperm.slane %v1165, 0
        %v1169 = vadd.f32 %v1164, %v1167
        %v1170 = vadd.f32 %v665, %v1169
        %v1171 = vld [vmem:[%s10] sm:$0x1]
        %v1172 = vld [vmem:[%s11] sm:$0x1]
        %v1173 = vsel %vm675, %v1170, 0.0
        %1174 = vadd.xlane.f32.xlu0 %v1173
        %v1175 = vpop.xlane.xlu0 %1174
        %v1176 = vrcp.pop 32.0
        %v1177 = vmul.f32 32.0, %v1176
        %v1178 = vsub.f32 1.0, %v1177
        %v1179 = vmul.f32 %v1176, %v1178
        %v1180 = vadd.f32 %v1176, %v1179
        %vm1181 = vweird.f32 %v1176
        %v1182 = vsel %vm1181, %v1176, %v1180
        %v1183 = vmul.f32 %v1175, %v1182
        %v1184 = vsub.f32 %v1170, %v1183
        %v1185 = vmul.f32 %v1184, %v1184
        %v1186 = vsel %vm675, %v1185, 0.0
        %1187 = vadd.xlane.f32.xlu0 %v1186
        %v1188 = vpop.xlane.xlu0 %1187
        %v1189 = vmul.f32 %v1188, %v1182
        %v1190 = vadd.f32 %v1189, 1e-05
        %v1191 = vrsqrt.pop %v1190
        %v1192 = vmul.f32 %v1191, %v1190
        %v1193 = vmul.f32 %v1192, %v1191
        %v1194 = vmul.f32 0.5, %v1193
        %v1195 = vsub.f32 1.5, %v1194
        %v1196 = vmul.f32 %v1191, %v1195
        %vm1197 = vweird.f32 %v1190
        %vm1198 = vweird.f32 %v1191
        %vm1199 = vmor %vm1197, %vm1198
        %v1200 = vsel %vm1199, %v1191, %v1196
        %v1201 = vmul.f32 %v1184, %v1200
        %v1203 = vperm.slane %v1171, 0
        %v1205 = vmul.f32 %v1201, %v1203
        %v1207 = vperm.slane %v1172, 0
        %v1209 = vadd.f32 %v1205, %v1207
        %v1210 = vld [vmem:[#allocation8] sm:$0xff]
        %v1211 = vld [vmem:[#allocation8 + $0x8] sm:$0xff]
        %v1212 = vld [vmem:[#allocation8 + $0x10] sm:$0xff]
        %v1213 = vld [vmem:[#allocation8 + $0x18] sm:$0xff]
        %v1214 = vld [vmem:[%s13] sm:$0x1]
        %v1216 = vperm.slane %v1214, 0
        %v1219 = vsel %vm675, %v1209, 0
        %1221 = vmatpush.msra.mxu0 0.0
        %1222 = vmatpush.msra.mxu0 0.0
        %1223 = vmatpush.msra.mxu0 0.0
        %1224 = vmatpush.msra.mxu0 0.0
        %1225 = vmatpush.msra.mxu0 0.0
        %1226 = vmatpush.msra.mxu0 0.0
        %1227 = vmatpush.msra.mxu0 0.0
        %1228 = vmatpush.msra.mxu0 0.0
        %1229 = vmatpush.msra.mxu0 0.0
        %1230 = vmatpush.msra.mxu0 0.0
        %1231 = vmatpush.msra.mxu0 0.0
        %1232 = vmatpush.msra.mxu0 0.0
        %1233 = vmatpush.msra.mxu0 %v1213
        %1234 = vmatpush.msra.mxu0 %v1212
        %1235 = vmatpush.msra.mxu0 %v1211
        %1236 = vmatpush.msra.mxu0 %v1210
        %1237 = vmatmul.f32.gmra.mxu0 %v1219
        %v1238 = vpop.f32.mrf.mxu0
        %v1239 = vadd.f32 %v1216, %v1238
        %1240 = vdwg.mxu0
        %v1241 = vmax.f32 %v1239, 0.0
        %v1242 = vld [vmem:[%s14] sm:$0xff]
        %v1243 = vld [vmem:[%s14 + $0x8] sm:$0xff]
        %v1244 = vld [vmem:[%s14 + $0x10] sm:$0xff]
        %v1245 = vld [vmem:[%s14 + $0x18] sm:$0xff]
        %v1246 = vld [vmem:[%s14 + $0x20] sm:$0xff]
        %v1247 = vld [vmem:[%s14 + $0x28] sm:$0xff]
        %v1248 = vld [vmem:[%s14 + $0x30] sm:$0xff]
        %v1249 = vld [vmem:[%s14 + $0x38] sm:$0xff]
        %v1250 = vld [vmem:[%s15] sm:$0x1]
        %v1252 = vperm.slane %v1250, 0
        %vm1254 = vcmask 523264
        %v1256 = vsel %vm1254, %v1241, 0
        %1258 = vmatpush.msra.mxu0 0.0
        %1259 = vmatpush.msra.mxu0 0.0
        %1260 = vmatpush.msra.mxu0 0.0
        %1261 = vmatpush.msra.mxu0 0.0
        %1262 = vmatpush.msra.mxu0 0.0
        %1263 = vmatpush.msra.mxu0 0.0
        %1264 = vmatpush.msra.mxu0 0.0
        %1265 = vmatpush.msra.mxu0 0.0
        %1266 = vmatpush.msra.mxu0 %v1249
        %1267 = vmatpush.msra.mxu0 %v1248
        %1268 = vmatpush.msra.mxu0 %v1247
        %1269 = vmatpush.msra.mxu0 %v1246
        %1270 = vmatpush.msra.mxu0 %v1245
        %1271 = vmatpush.msra.mxu0 %v1244
        %1272 = vmatpush.msra.mxu0 %v1243
        %1273 = vmatpush.msra.mxu0 %v1242
        %1274 = vmatmul.f32.gmra.mxu0 %v1256
        %v1275 = vpop.f32.mrf.mxu0
        %v1276 = vadd.f32 %v1252, %v1275
        %1277 = vdwg.mxu0
        %v1278 = vadd.f32 %v1209, %v1276
        %v1279 = vld [vmem:[%s16] sm:$0x1]
        %v1280 = vld [vmem:[%s17] sm:$0x1]
        %v1281 = vsel %vm675, %v1278, 0.0
        %1282 = vadd.xlane.f32.xlu0 %v1281
        %v1283 = vpop.xlane.xlu0 %1282
        %v1284 = vmul.f32 %v1283, %v1182
        %v1285 = vsub.f32 %v1278, %v1284
        %v1286 = vmul.f32 %v1285, %v1285
        %v1287 = vsel %vm675, %v1286, 0.0
        %1288 = vadd.xlane.f32.xlu0 %v1287
        %v1289 = vpop.xlane.xlu0 %1288
        %v1290 = vmul.f32 %v1289, %v1182
        %v1291 = vadd.f32 %v1290, 1e-05
        %v1292 = vrsqrt.pop %v1291
        %v1293 = vmul.f32 %v1292, %v1291
        %v1294 = vmul.f32 %v1293, %v1292
        %v1295 = vmul.f32 0.5, %v1294
        %v1296 = vsub.f32 1.5, %v1295
        %v1297 = vmul.f32 %v1292, %v1296
        %vm1298 = vweird.f32 %v1291
        %vm1299 = vweird.f32 %v1292
        %vm1300 = vmor %vm1298, %vm1299
        %v1301 = vsel %vm1300, %v1292, %v1297
        %v1302 = vmul.f32 %v1285, %v1301
        %v1304 = vperm.slane %v1279, 0
        %v1306 = vmul.f32 %v1302, %v1304
        %v1308 = vperm.slane %v1280, 0
        %v1310 = vadd.f32 %v1306, %v1308
        %1311 = vst.msk [vmem:[%s664] sm:$0xff] %vm675, %v1310
        %s1312 = sand.u32 %s435, 1
        %s1313 = scalar_lea.sflag [#allocation4], %s1312
        %s1314 = sand.u32 %s435, 1
        %s1315 = smul.addr %s1314, 8
        %s1316 = scalar_lea.vmem [#allocation10], %s1315
        // Predicated region
        $region109: #{tpu_custom_call.1} parent=91 // pred_check
          %p1317 = pneg %p445
        $region110: #{tpu_custom_call.1} parent=91 // pred_check_branch
          %1319 = sbr.rel (%p1317) target = $region112
        $region111: #{tpu_custom_call.1} parent=91 // pred_region
          %1321 = vsyncadd %s1313, 0
          %s1322 = smul.addr %s39, 8
          %s1323 = scalar_lea.hbm %s18, %s1322
          %s1325 = sshll.u32 %s1316, 4
          %s1326 = int_to_ptr.vmem [resolvable:$true] %s1325
          %s1327 = sshll.u32 %s1323, 4
          %s1328 = int_to_ptr.hbm [resolvable:$true] %s1327
          %1330 = dma.vmem_to_hbm [thread:$0]  %s1326, 128, %s1328, %s1313
        $region112: #{tpu_custom_call.1} parent=91 // pred_fallthru
          _
      $region92: #{tpu_custom_call.1} parent=5 // pred_fallthru
        _
      %p1331 = scmp.le.s32.totalorder 2, %s34
      // Predicated region
      $region113: #{tpu_custom_call.1} parent=5 // pred_check
        %p1332 = pneg %p1331
      $region114: #{tpu_custom_call.1} parent=5 // pred_check_branch
        %1334 = sbr.rel (%p1332) target = $region116
      $region115: #{tpu_custom_call.1} parent=5 // pred_region
        %s1335 = ssub.s32 %s34, 2
        // Predicated region
        $region117: #{tpu_custom_call.1} parent=115 // pred_check
          %p1336 = pneg %p451
        $region118: #{tpu_custom_call.1} parent=115 // pred_check_branch
          %1338 = sbr.rel (%p1336) target = $region120
        $region119: #{tpu_custom_call.1} parent=115 // pred_region
          %s1339 = sand.u32 %s436, 1
          %s1340 = scalar_lea.sflag [#allocation4], %s1339
          %s1341 = sand.u32 %s436, 1
          %s1342 = smul.addr %s1341, 8
          %s1343 = scalar_lea.vmem [#allocation10], %s1342
          %1345 = dma.done %s1340, 128
        $region120: #{tpu_custom_call.1} parent=115 // pred_fallthru
          _
      $region116: #{tpu_custom_call.1} parent=5 // pred_fallthru
        _
    $region6: #{tpu_custom_call.1} parent=1 // loop_footer
      %s38 = sadd.s32 1, %s34
    $region7: #{tpu_custom_call.1} parent=1 // loop_footer_branch
      %33 = sbr.rel target = $region3
    $region8: #{tpu_custom_call.1} parent=1 // loop_exit
      _
    %1346 = vsyncpa [#allocation3], 1
    %s1347 = scalar_lea.sflag [#allocation3], 1
    %1348 = vsyncpa %s1347, 1
    %1349 = vsyncpa [#allocation6], 1
    %s1350 = scalar_lea.sflag [#allocation6], 1
    %1351 = vsyncpa %s1350, 1
    %1352 = vsyncpa [#allocation9], 1
    %1353 = vsyncpa [#allocation4], 1
    %s1354 = scalar_lea.sflag [#allocation4], 1
    %1355 = vsyncpa %s1354, 1

</llo_original>
